<compile_context>
chip_gen: v7x
topology: tpu7x:2x2x1
jax: 0.10.0
libtpu: 0.0.40
codegen_flags: <defaults>
</compile_context>

<pallas_src>
import jax
import jax.numpy as jnp
from jax import lax
from jax.experimental import pallas as pl
from jax.experimental.pallas import tpu as pltpu


def lstm_chunk_kernel(x_ref, wih_ref, whh_ref, h0_ref, c0_ref, out_ref,
                      h_scr, c_scr):
    """Runs t_chunk LSTM steps per grid iteration (PyTorch gate order i,f,g,o).

    x_ref:   (t_chunk*B, D+1)  time-major x slab, last column is 1.0 (bias)
    wih_ref: (D+1, 4H)         [W_ih^T ; (b_ih+b_hh)] with sigmoid 0.5-scale
                               folded into i/f/o columns (loop-invariant)
    whh_ref: (H, 4H)           W_hh^T, same column scaling (loop-invariant,
                               may be bf16 for single-pass MXU)
    h0_ref:  (B, H)            initial hidden state (used only at chunk 0)
    c0_ref:  (B, H)            initial cell state   (used only at chunk 0)
    out_ref: (B, t_chunk*H)    lane-dense hidden outputs for this chunk
    h_scr/c_scr: (B, H) f32    state carried across grid steps (time-chunk
                               axis is 'arbitrary' == sequential, so safe)
    """
    chunk = pl.program_id(0)

    @pl.when(chunk == 0)
    def _():
        h_scr[...] = h0_ref[...].astype(jnp.float32)
        c_scr[...] = c0_ref[...].astype(jnp.float32)

    B, H = h_scr.shape
    n_rows = x_ref.shape[0]
    t_chunk = n_rows // B

    # Fused input projection for the whole chunk: one (t_chunk*B, D+1) x
    # (D+1, 4H) matmul.  Bias and the sigmoid pre-scale are already folded
    # into wih_ref, and this matmul is off the serial h->h dependency.
    gx = jnp.dot(x_ref[...], wih_ref[...],
                 preferred_element_type=jnp.float32)          # (t_chunk*B, 4H)

    whh = whh_ref[...]                 # loaded once per chunk (constant block)
    mxu_dtype = whh.dtype
    h = h_scr[...]
    c = c_scr[...]

    hs = []
    # Statically unrolled chunk loop; every slice is static and each step has
    # exactly one (B,H)x(H,4H) matmul on the serial critical path.
    for t in range(t_chunk):
        gates = gx[t * B:(t + 1) * B, :] + jnp.dot(
            h.astype(mxu_dtype), whh, preferred_element_type=jnp.float32)
        # sigmoid(z) = 0.5*tanh(0.5 z)+0.5 with the 0.5 pre-scale folded into
        # the weights -> a single full-width EUP tanh pass over (B, 4H).
        t_all = jnp.tanh(gates)
        i_g = 0.5 * t_all[:, 0 * H:1 * H] + 0.5
        f_g = 0.5 * t_all[:, 1 * H:2 * H] + 0.5
        g_g = t_all[:, 2 * H:3 * H]
        o_g = 0.5 * t_all[:, 3 * H:4 * H] + 0.5
        c = f_g * c + i_g * g_g
        h = o_g * jnp.tanh(c)
        hs.append(h)

    h_scr[...] = h
    c_scr[...] = c
    # Single lane-dense store per chunk (t_chunk*H is a multiple of 128).
    out_ref[...] = jnp.concatenate(hs, axis=-1).astype(out_ref.dtype)


def lstm_encoder(x, h0, c0, w_ih, w_hh, b_ih, b_hh, *, t_chunk=8,
                 mxu_dtype=jnp.float32):
    """Encoder.forward: output, _ = lstm(x, (h0, c0)); return output.

    x:  (B, T, D)   batch_first
    h0: (1, B, H), c0: (1, B, H)
    w_ih: (4H, D), w_hh: (4H, H), b_ih/b_hh: (4H,)
    returns (B, T, H)
    """
    B, T, D = x.shape
    H = w_hh.shape[1]

    # Pad batch to a multiple of 8 sublanes; pad time to a multiple of t_chunk.
    # NOTE: padded batch rows / padded time steps evolve harmless garbage state
    # inside the kernel; they are sliced off below and never produce NaN/Inf
    # paths (all ops are tanh / mul / add on finite values).
    B_pad = max(8, -(-B // 8) * 8)
    T_pad = -(-T // t_chunk) * t_chunk

    # Gate scale: sigmoid gates (i, f, o) pre-scaled by 0.5, tanh gate (g) by 1.
    gate_scale = jnp.concatenate([
        jnp.full((H,), 0.5, jnp.float32),
        jnp.full((H,), 0.5, jnp.float32),
        jnp.ones((H,), jnp.float32),
        jnp.full((H,), 0.5, jnp.float32)])                      # (4H,)

    # [W_ih^T ; bias] with the gate scale folded into the columns.  The bias is
    # injected through a ones column appended to x, so the kernel needs no
    # separate bias add.
    bias = (b_ih.astype(jnp.float32) + b_hh.astype(jnp.float32)) * gate_scale
    wih_aug = jnp.concatenate(
        [jnp.transpose(w_ih).astype(jnp.float32) * gate_scale,
         bias[None, :]], axis=0)                                # (D+1, 4H)
    # Only the recurrent-matmul operands are (optionally) cast to mxu_dtype;
    # accumulation and all VPU/EUP math stay f32.
    whh_t = (jnp.transpose(w_hh).astype(jnp.float32) * gate_scale
             ).astype(mxu_dtype)                                # (H, 4H)

    # Time-major, flattened x with a ones column: rows ordered (t, b) so each
    # LSTM step reads a contiguous 8-sublane-aligned slice of the gate slab.
    x_p = jnp.pad(x.astype(jnp.float32),
                  ((0, B_pad - B), (0, T_pad - T), (0, 0)))     # (B_pad,T_pad,D)
    x_tbd = jnp.transpose(x_p, (1, 0, 2))                       # (T_pad,B_pad,D)
    x2d = x_tbd.reshape(T_pad * B_pad, D)
    x_aug = jnp.concatenate(
        [x2d, jnp.ones((T_pad * B_pad, 1), jnp.float32)], axis=1)  # (T*B, D+1)

    h0_p = jnp.pad(h0[0].astype(jnp.float32), ((0, B_pad - B), (0, 0)))
    c0_p = jnp.pad(c0[0].astype(jnp.float32), ((0, B_pad - B), (0, 0)))

    n_chunks = T_pad // t_chunk

    out2d = pl.pallas_call(
        lstm_chunk_kernel,
        # 2D lane-dense output: column (c*t_chunk + t)*H + h == time-major
        # hidden; the reshape back to (B, T, H) below is contiguous (free).
        out_shape=jax.ShapeDtypeStruct((B_pad, T_pad * H), x.dtype),
        grid_spec=pltpu.PrefetchScalarGridSpec(
            num_scalar_prefetch=0,
            grid=(n_chunks,),
            in_specs=[
                # per-chunk time-major x slab (fused input projection)
                pl.BlockSpec((t_chunk * B_pad, D + 1), lambda c: (c, 0)),
                # loop-invariant blocks (constant index maps -> copied once)
                pl.BlockSpec((D + 1, 4 * H), lambda c: (0, 0)),  # W_ih^T|bias
                pl.BlockSpec((H, 4 * H), lambda c: (0, 0)),      # W_hh^T
                pl.BlockSpec((B_pad, H), lambda c: (0, 0)),      # h0
                pl.BlockSpec((B_pad, H), lambda c: (0, 0)),      # c0
            ],
            out_specs=pl.BlockSpec((B_pad, t_chunk * H), lambda c: (0, c)),
            scratch_shapes=[
                pltpu.VMEM((B_pad, H), jnp.float32),             # h state
                pltpu.VMEM((B_pad, H), jnp.float32),             # c state
            ],
        ),
        compiler_params=pltpu.CompilerParams(
            # time-chunk axis carries h/c state -> must stay sequential
            dimension_semantics=("arbitrary",),
            # explicit scoped-VMEM budget; re-derive for production H /
            # t_chunk, especially on v7x (64 MiB physical VMEM).
            vmem_limit_bytes=32 * 1024 * 1024),
    )(x_aug, wih_aug, whh_t, h0_p, c0_p)

    out = out2d.reshape(B_pad, T_pad, H)
    return out[:B, :T, :]


def lstm_reference(x, h0, c0, w_ih, w_hh, b_ih, b_hh):
    """Pure-JAX reference (PyTorch LSTM semantics) for verification."""
    H = w_hh.shape[1]
    bias = b_ih + b_hh

    def step(carry, x_t):
        h, c = carry
        gates = x_t @ w_ih.T + h @ w_hh.T + bias
        i_g = jax.nn.sigmoid(gates[:, 0 * H:1 * H])
        f_g = jax.nn.sigmoid(gates[:, 1 * H:2 * H])
        g_g = jnp.tanh(gates[:, 2 * H:3 * H])
        o_g = jax.nn.sigmoid(gates[:, 3 * H:4 * H])
        c_new = f_g * c + i_g * g_g
        h_new = o_g * jnp.tanh(c_new)
        return (h_new, c_new), h_new

    x_tbd = jnp.transpose(x, (1, 0, 2))
    (_, _), hs = lax.scan(step, (h0[0], c0[0]), x_tbd)
    return jnp.transpose(hs, (1, 0, 2))


if __name__ == "__main__":
    # Module: input_dim=2; small hidden=32 for the test, seq=16 with t_chunk=8
    # so the chunked grid actually carries h/c state across grid steps.
    B, T, D, H = 2, 16, 2, 32

    key = jax.random.PRNGKey(0)
    k = jax.random.split(key, 7)
    bound = 1.0 / jnp.sqrt(H)   # PyTorch LSTM init: U(-1/sqrt(H), 1/sqrt(H))

    w_ih = jax.random.uniform(k[0], (4 * H, D), jnp.float32, -bound, bound)
    w_hh = jax.random.uniform(k[1], (4 * H, H), jnp.float32, -bound, bound)
    b_ih = jax.random.uniform(k[2], (4 * H,), jnp.float32, -bound, bound)
    b_hh = jax.random.uniform(k[3], (4 * H,), jnp.float32, -bound, bound)

    x = jax.random.normal(k[4], (B, T, D), jnp.float32)
    h0 = jax.random.normal(k[5], (1, B, H), jnp.float32)
    c0 = jax.random.normal(k[6], (1, B, H), jnp.float32)

    ref = lstm_reference(x, h0, c0, w_ih, w_hh, b_ih, b_hh)

    # Exact-f32 path (matches PyTorch f32 LSTM to tight tolerance).
    out = lstm_encoder(x, h0, c0, w_ih, w_hh, b_ih, b_hh,
                       t_chunk=8, mxu_dtype=jnp.float32)
    out = jax.block_until_ready(out)
    assert out.shape == (B, T, H)
    assert jnp.allclose(out, ref, atol=1e-5, rtol=1e-5), "f32 mismatch vs reference"

    # bf16 MXU-operand path (production fast path; f32 accumulate + f32 state),
    # checked at a correspondingly looser tolerance.
    out_bf16 = lstm_encoder(x, h0, c0, w_ih, w_hh, b_ih, b_hh,
                            t_chunk=8, mxu_dtype=jnp.bfloat16)
    out_bf16 = jax.block_until_ready(out_bf16)
    assert jnp.allclose(out_bf16, ref, atol=3e-2, rtol=0), "bf16 mismatch vs reference"

    print("KERNEL_OK")
</pallas_src>

<mosaic_0001>
module attributes {stable_mosaic.version = 11 : i64} {
  func.func @lstm_chunk_kernel(%arg0: i32, %arg1: memref<64x3xf32, #tpu.memory_space<vmem>>, %arg2: memref<3x128xf32, #tpu.memory_space<vmem>>, %arg3: memref<32x128xf32, #tpu.memory_space<vmem>>, %arg4: memref<8x32xf32, #tpu.memory_space<vmem>>, %arg5: memref<8x32xf32, #tpu.memory_space<vmem>>, %arg6: memref<8x256xf32, #tpu.memory_space<vmem>>, %arg7: memref<8x32xf32, #tpu.memory_space<vmem>>, %arg8: memref<8x32xf32, #tpu.memory_space<vmem>>) attributes {dimension_semantics = [#tpu.dimension_semantics<arbitrary>], iteration_bounds = array<i64: 2>, scalar_prefetch = 0 : i64, scratch_operands = 2 : i64, tpu.core_type = #tpu.core_type<tc>, window_params = [{transform_indices = @transform_0, window_bounds = array<i64: 64, 3>}, {pipeline_mode = #tpu.pipeline_mode<synchronous>, transform_indices = @transform_1, window_bounds = array<i64: 3, 128>}, {pipeline_mode = #tpu.pipeline_mode<synchronous>, transform_indices = @transform_2, window_bounds = array<i64: 32, 128>}, {pipeline_mode = #tpu.pipeline_mode<synchronous>, transform_indices = @transform_3, window_bounds = array<i64: 8, 32>}, {pipeline_mode = #tpu.pipeline_mode<synchronous>, transform_indices = @transform_4, window_bounds = array<i64: 8, 32>}, {transform_indices = @transform_5, window_bounds = array<i64: 8, 256>}]} {
    %c0_i32 = arith.constant 0 : i32
    %0 = arith.cmpi eq, %arg0, %c0_i32 : i32
    %1 = arith.extui %0 : i1 to i32
    %c0_i32_0 = arith.constant 0 : i32
    %2 = arith.cmpi ne, %1, %c0_i32_0 : i32
    scf.if %2 {
      %c0_72 = arith.constant 0 : index
      %c0_73 = arith.constant 0 : index
      %213 = vector.load %arg4[%c0_72, %c0_73] : memref<8x32xf32, #tpu.memory_space<vmem>>, vector<8x32xf32>
      %c0_74 = arith.constant 0 : index
      %c0_75 = arith.constant 0 : index
      %214 = vector.load %arg7[%c0_74, %c0_75] : memref<8x32xf32, #tpu.memory_space<vmem>>, vector<8x32xf32>
      tpu.vector_store %arg7[%c0_74, %c0_75], %213 {strides = array<i32>} : memref<8x32xf32, #tpu.memory_space<vmem>>, vector<8x32xf32>,
      %c0_76 = arith.constant 0 : index
      %c0_77 = arith.constant 0 : index
      %215 = vector.load %arg5[%c0_76, %c0_77] : memref<8x32xf32, #tpu.memory_space<vmem>>, vector<8x32xf32>
      %c0_78 = arith.constant 0 : index
      %c0_79 = arith.constant 0 : index
      %216 = vector.load %arg8[%c0_78, %c0_79] : memref<8x32xf32, #tpu.memory_space<vmem>>, vector<8x32xf32>
      tpu.vector_store %arg8[%c0_78, %c0_79], %215 {strides = array<i32>} : memref<8x32xf32, #tpu.memory_space<vmem>>, vector<8x32xf32>,
    } else {
    }
    %c0 = arith.constant 0 : index
    %c0_1 = arith.constant 0 : index
    %3 = vector.load %arg1[%c0, %c0_1] : memref<64x3xf32, #tpu.memory_space<vmem>>, vector<64x3xf32>
    %c0_2 = arith.constant 0 : index
    %c0_3 = arith.constant 0 : index
    %4 = vector.load %arg2[%c0_2, %c0_3] : memref<3x128xf32, #tpu.memory_space<vmem>>, vector<3x128xf32>
    %cst = arith.constant dense<0.000000e+00> : vector<64x128xf32>
    %5 = tpu.matmul %3, %4, %cst {dimension_numbers = #tpu.dot_dimension_numbers<[1], [0], [0], [1], [0, 0, 1, 1], [], []>} : vector<64x3xf32>, vector<3x128xf32>, vector<64x128xf32> -> vector<64x128xf32>
    %c0_4 = arith.constant 0 : index
    %c0_5 = arith.constant 0 : index
    %6 = vector.load %arg3[%c0_4, %c0_5] : memref<32x128xf32, #tpu.memory_space<vmem>>, vector<32x128xf32>
    %c0_6 = arith.constant 0 : index
    %c0_7 = arith.constant 0 : index
    %7 = vector.load %arg7[%c0_6, %c0_7] : memref<8x32xf32, #tpu.memory_space<vmem>>, vector<8x32xf32>
    %c0_8 = arith.constant 0 : index
    %c0_9 = arith.constant 0 : index
    %8 = vector.load %arg8[%c0_8, %c0_9] : memref<8x32xf32, #tpu.memory_space<vmem>>, vector<8x32xf32>
    %9 = vector.extract_strided_slice %5 {offsets = [0, 0], sizes = [8, 128], strides = [1, 1]} : vector<64x128xf32> to vector<8x128xf32>
    %cst_10 = arith.constant dense<0.000000e+00> : vector<8x128xf32>
    %10 = tpu.matmul %7, %6, %cst_10 {dimension_numbers = #tpu.dot_dimension_numbers<[1], [0], [0], [1], [0, 0, 1, 1], [], []>} : vector<8x32xf32>, vector<32x128xf32>, vector<8x128xf32> -> vector<8x128xf32>
    %11 = arith.addf %9, %10 : vector<8x128xf32>
    %12 = math.tanh %11 : vector<8x128xf32>
    %13 = vector.extract_strided_slice %12 {offsets = [0, 0], sizes = [8, 32], strides = [1, 1]} : vector<8x128xf32> to vector<8x32xf32>
    %cst_11 = arith.constant 5.000000e-01 : f32
    %14 = vector.broadcast %cst_11 : f32 to vector<8x32xf32>
    %15 = arith.mulf %14, %13 : vector<8x32xf32>
    %cst_12 = arith.constant 5.000000e-01 : f32
    %16 = vector.broadcast %cst_12 : f32 to vector<8x32xf32>
    %17 = arith.addf %15, %16 : vector<8x32xf32>
    %18 = vector.extract_strided_slice %12 {offsets = [0, 32], sizes = [8, 32], strides = [1, 1]} : vector<8x128xf32> to vector<8x32xf32>
    %cst_13 = arith.constant 5.000000e-01 : f32
    %19 = vector.broadcast %cst_13 : f32 to vector<8x32xf32>
    %20 = arith.mulf %19, %18 : vector<8x32xf32>
    %cst_14 = arith.constant 5.000000e-01 : f32
    %21 = vector.broadcast %cst_14 : f32 to vector<8x32xf32>
    %22 = arith.addf %20, %21 : vector<8x32xf32>
    %23 = vector.extract_strided_slice %12 {offsets = [0, 64], sizes = [8, 32], strides = [1, 1]} : vector<8x128xf32> to vector<8x32xf32>
    %24 = vector.extract_strided_slice %12 {offsets = [0, 96], sizes = [8, 32], strides = [1, 1]} : vector<8x128xf32> to vector<8x32xf32>
    %cst_15 = arith.constant 5.000000e-01 : f32
    %25 = vector.broadcast %cst_15 : f32 to vector<8x32xf32>
    %26 = arith.mulf %25, %24 : vector<8x32xf32>
    %cst_16 = arith.constant 5.000000e-01 : f32
    %27 = vector.broadcast %cst_16 : f32 to vector<8x32xf32>
    %28 = arith.addf %26, %27 : vector<8x32xf32>
    %29 = arith.mulf %22, %8 : vector<8x32xf32>
    %30 = arith.mulf %17, %23 : vector<8x32xf32>
    %31 = arith.addf %29, %30 : vector<8x32xf32>
    %32 = math.tanh %31 : vector<8x32xf32>
    %33 = arith.mulf %28, %32 : vector<8x32xf32>
    %34 = vector.extract_strided_slice %5 {offsets = [8, 0], sizes = [8, 128], strides = [1, 1]} : vector<64x128xf32> to vector<8x128xf32>
    %cst_17 = arith.constant dense<0.000000e+00> : vector<8x128xf32>
    %35 = tpu.matmul %33, %6, %cst_17 {dimension_numbers = #tpu.dot_dimension_numbers<[1], [0], [0], [1], [0, 0, 1, 1], [], []>} : vector<8x32xf32>, vector<32x128xf32>, vector<8x128xf32> -> vector<8x128xf32>
    %36 = arith.addf %34, %35 : vector<8x128xf32>
    %37 = math.tanh %36 : vector<8x128xf32>
    %38 = vector.extract_strided_slice %37 {offsets = [0, 0], sizes = [8, 32], strides = [1, 1]} : vector<8x128xf32> to vector<8x32xf32>
    %cst_18 = arith.constant 5.000000e-01 : f32
    %39 = vector.broadcast %cst_18 : f32 to vector<8x32xf32>
    %40 = arith.mulf %39, %38 : vector<8x32xf32>
    %cst_19 = arith.constant 5.000000e-01 : f32
    %41 = vector.broadcast %cst_19 : f32 to vector<8x32xf32>
    %42 = arith.addf %40, %41 : vector<8x32xf32>
    %43 = vector.extract_strided_slice %37 {offsets = [0, 32], sizes = [8, 32], strides = [1, 1]} : vector<8x128xf32> to vector<8x32xf32>
    %cst_20 = arith.constant 5.000000e-01 : f32
    %44 = vector.broadcast %cst_20 : f32 to vector<8x32xf32>
    %45 = arith.mulf %44, %43 : vector<8x32xf32>
    %cst_21 = arith.constant 5.000000e-01 : f32
    %46 = vector.broadcast %cst_21 : f32 to vector<8x32xf32>
    %47 = arith.addf %45, %46 : vector<8x32xf32>
    %48 = vector.extract_strided_slice %37 {offsets = [0, 64], sizes = [8, 32], strides = [1, 1]} : vector<8x128xf32> to vector<8x32xf32>
    %49 = vector.extract_strided_slice %37 {offsets = [0, 96], sizes = [8, 32], strides = [1, 1]} : vector<8x128xf32> to vector<8x32xf32>
    %cst_22 = arith.constant 5.000000e-01 : f32
    %50 = vector.broadcast %cst_22 : f32 to vector<8x32xf32>
    %51 = arith.mulf %50, %49 : vector<8x32xf32>
    %cst_23 = arith.constant 5.000000e-01 : f32
    %52 = vector.broadcast %cst_23 : f32 to vector<8x32xf32>
    %53 = arith.addf %51, %52 : vector<8x32xf32>
    %54 = arith.mulf %47, %31 : vector<8x32xf32>
    %55 = arith.mulf %42, %48 : vector<8x32xf32>
    %56 = arith.addf %54, %55 : vector<8x32xf32>
    %57 = math.tanh %56 : vector<8x32xf32>
    %58 = arith.mulf %53, %57 : vector<8x32xf32>
    %59 = vector.extract_strided_slice %5 {offsets = [16, 0], sizes = [8, 128], strides = [1, 1]} : vector<64x128xf32> to vector<8x128xf32>
    %cst_24 = arith.constant dense<0.000000e+00> : vector<8x128xf32>
    %60 = tpu.matmul %58, %6, %cst_24 {dimension_numbers = #tpu.dot_dimension_numbers<[1], [0], [0], [1], [0, 0, 1, 1], [], []>} : vector<8x32xf32>, vector<32x128xf32>, vector<8x128xf32> -> vector<8x128xf32>
    %61 = arith.addf %59, %60 : vector<8x128xf32>
    %62 = math.tanh %61 : vector<8x128xf32>
    %63 = vector.extract_strided_slice %62 {offsets = [0, 0], sizes = [8, 32], strides = [1, 1]} : vector<8x128xf32> to vector<8x32xf32>
    %cst_25 = arith.constant 5.000000e-01 : f32
    %64 = vector.broadcast %cst_25 : f32 to vector<8x32xf32>
    %65 = arith.mulf %64, %63 : vector<8x32xf32>
    %cst_26 = arith.constant 5.000000e-01 : f32
    %66 = vector.broadcast %cst_26 : f32 to vector<8x32xf32>
    %67 = arith.addf %65, %66 : vector<8x32xf32>
    %68 = vector.extract_strided_slice %62 {offsets = [0, 32], sizes = [8, 32], strides = [1, 1]} : vector<8x128xf32> to vector<8x32xf32>
    %cst_27 = arith.constant 5.000000e-01 : f32
    %69 = vector.broadcast %cst_27 : f32 to vector<8x32xf32>
    %70 = arith.mulf %69, %68 : vector<8x32xf32>
    %cst_28 = arith.constant 5.000000e-01 : f32
    %71 = vector.broadcast %cst_28 : f32 to vector<8x32xf32>
    %72 = arith.addf %70, %71 : vector<8x32xf32>
    %73 = vector.extract_strided_slice %62 {offsets = [0, 64], sizes = [8, 32], strides = [1, 1]} : vector<8x128xf32> to vector<8x32xf32>
    %74 = vector.extract_strided_slice %62 {offsets = [0, 96], sizes = [8, 32], strides = [1, 1]} : vector<8x128xf32> to vector<8x32xf32>
    %cst_29 = arith.constant 5.000000e-01 : f32
    %75 = vector.broadcast %cst_29 : f32 to vector<8x32xf32>
    %76 = arith.mulf %75, %74 : vector<8x32xf32>
    %cst_30 = arith.constant 5.000000e-01 : f32
    %77 = vector.broadcast %cst_30 : f32 to vector<8x32xf32>
    %78 = arith.addf %76, %77 : vector<8x32xf32>
    %79 = arith.mulf %72, %56 : vector<8x32xf32>
    %80 = arith.mulf %67, %73 : vector<8x32xf32>
    %81 = arith.addf %79, %80 : vector<8x32xf32>
    %82 = math.tanh %81 : vector<8x32xf32>
    %83 = arith.mulf %78, %82 : vector<8x32xf32>
    %84 = vector.extract_strided_slice %5 {offsets = [24, 0], sizes = [8, 128], strides = [1, 1]} : vector<64x128xf32> to vector<8x128xf32>
    %cst_31 = arith.constant dense<0.000000e+00> : vector<8x128xf32>
    %85 = tpu.matmul %83, %6, %cst_31 {dimension_numbers = #tpu.dot_dimension_numbers<[1], [0], [0], [1], [0, 0, 1, 1], [], []>} : vector<8x32xf32>, vector<32x128xf32>, vector<8x128xf32> -> vector<8x128xf32>
    %86 = arith.addf %84, %85 : vector<8x128xf32>
    %87 = math.tanh %86 : vector<8x128xf32>
    %88 = vector.extract_strided_slice %87 {offsets = [0, 0], sizes = [8, 32], strides = [1, 1]} : vector<8x128xf32> to vector<8x32xf32>
    %cst_32 = arith.constant 5.000000e-01 : f32
    %89 = vector.broadcast %cst_32 : f32 to vector<8x32xf32>
    %90 = arith.mulf %89, %88 : vector<8x32xf32>
    %cst_33 = arith.constant 5.000000e-01 : f32
    %91 = vector.broadcast %cst_33 : f32 to vector<8x32xf32>
    %92 = arith.addf %90, %91 : vector<8x32xf32>
    %93 = vector.extract_strided_slice %87 {offsets = [0, 32], sizes = [8, 32], strides = [1, 1]} : vector<8x128xf32> to vector<8x32xf32>
    %cst_34 = arith.constant 5.000000e-01 : f32
    %94 = vector.broadcast %cst_34 : f32 to vector<8x32xf32>
    %95 = arith.mulf %94, %93 : vector<8x32xf32>
    %cst_35 = arith.constant 5.000000e-01 : f32
    %96 = vector.broadcast %cst_35 : f32 to vector<8x32xf32>
    %97 = arith.addf %95, %96 : vector<8x32xf32>
    %98 = vector.extract_strided_slice %87 {offsets = [0, 64], sizes = [8, 32], strides = [1, 1]} : vector<8x128xf32> to vector<8x32xf32>
    %99 = vector.extract_strided_slice %87 {offsets = [0, 96], sizes = [8, 32], strides = [1, 1]} : vector<8x128xf32> to vector<8x32xf32>
    %cst_36 = arith.constant 5.000000e-01 : f32
    %100 = vector.broadcast %cst_36 : f32 to vector<8x32xf32>
    %101 = arith.mulf %100, %99 : vector<8x32xf32>
    %cst_37 = arith.constant 5.000000e-01 : f32
    %102 = vector.broadcast %cst_37 : f32 to vector<8x32xf32>
    %103 = arith.addf %101, %102 : vector<8x32xf32>
    %104 = arith.mulf %97, %81 : vector<8x32xf32>
    %105 = arith.mulf %92, %98 : vector<8x32xf32>
    %106 = arith.addf %104, %105 : vector<8x32xf32>
    %107 = math.tanh %106 : vector<8x32xf32>
    %108 = arith.mulf %103, %107 : vector<8x32xf32>
    %109 = vector.extract_strided_slice %5 {offsets = [32, 0], sizes = [8, 128], strides = [1, 1]} : vector<64x128xf32> to vector<8x128xf32>
    %cst_38 = arith.constant dense<0.000000e+00> : vector<8x128xf32>
    %110 = tpu.matmul %108, %6, %cst_38 {dimension_numbers = #tpu.dot_dimension_numbers<[1], [0], [0], [1], [0, 0, 1, 1], [], []>} : vector<8x32xf32>, vector<32x128xf32>, vector<8x128xf32> -> vector<8x128xf32>
    %111 = arith.addf %109, %110 : vector<8x128xf32>
    %112 = math.tanh %111 : vector<8x128xf32>
    %113 = vector.extract_strided_slice %112 {offsets = [0, 0], sizes = [8, 32], strides = [1, 1]} : vector<8x128xf32> to vector<8x32xf32>
    %cst_39 = arith.constant 5.000000e-01 : f32
    %114 = vector.broadcast %cst_39 : f32 to vector<8x32xf32>
    %115 = arith.mulf %114, %113 : vector<8x32xf32>
    %cst_40 = arith.constant 5.000000e-01 : f32
    %116 = vector.broadcast %cst_40 : f32 to vector<8x32xf32>
    %117 = arith.addf %115, %116 : vector<8x32xf32>
    %118 = vector.extract_strided_slice %112 {offsets = [0, 32], sizes = [8, 32], strides = [1, 1]} : vector<8x128xf32> to vector<8x32xf32>
    %cst_41 = arith.constant 5.000000e-01 : f32
    %119 = vector.broadcast %cst_41 : f32 to vector<8x32xf32>
    %120 = arith.mulf %119, %118 : vector<8x32xf32>
    %cst_42 = arith.constant 5.000000e-01 : f32
    %121 = vector.broadcast %cst_42 : f32 to vector<8x32xf32>
    %122 = arith.addf %120, %121 : vector<8x32xf32>
    %123 = vector.extract_strided_slice %112 {offsets = [0, 64], sizes = [8, 32], strides = [1, 1]} : vector<8x128xf32> to vector<8x32xf32>
    %124 = vector.extract_strided_slice %112 {offsets = [0, 96], sizes = [8, 32], strides = [1, 1]} : vector<8x128xf32> to vector<8x32xf32>
    %cst_43 = arith.constant 5.000000e-01 : f32
    %125 = vector.broadcast %cst_43 : f32 to vector<8x32xf32>
    %126 = arith.mulf %125, %124 : vector<8x32xf32>
    %cst_44 = arith.constant 5.000000e-01 : f32
    %127 = vector.broadcast %cst_44 : f32 to vector<8x32xf32>
    %128 = arith.addf %126, %127 : vector<8x32xf32>
    %129 = arith.mulf %122, %106 : vector<8x32xf32>
    %130 = arith.mulf %117, %123 : vector<8x32xf32>
    %131 = arith.addf %129, %130 : vector<8x32xf32>
    %132 = math.tanh %131 : vector<8x32xf32>
    %133 = arith.mulf %128, %132 : vector<8x32xf32>
    %134 = vector.extract_strided_slice %5 {offsets = [40, 0], sizes = [8, 128], strides = [1, 1]} : vector<64x128xf32> to vector<8x128xf32>
    %cst_45 = arith.constant dense<0.000000e+00> : vector<8x128xf32>
    %135 = tpu.matmul %133, %6, %cst_45 {dimension_numbers = #tpu.dot_dimension_numbers<[1], [0], [0], [1], [0, 0, 1, 1], [], []>} : vector<8x32xf32>, vector<32x128xf32>, vector<8x128xf32> -> vector<8x128xf32>
    %136 = arith.addf %134, %135 : vector<8x128xf32>
    %137 = math.tanh %136 : vector<8x128xf32>
    %138 = vector.extract_strided_slice %137 {offsets = [0, 0], sizes = [8, 32], strides = [1, 1]} : vector<8x128xf32> to vector<8x32xf32>
    %cst_46 = arith.constant 5.000000e-01 : f32
    %139 = vector.broadcast %cst_46 : f32 to vector<8x32xf32>
    %140 = arith.mulf %139, %138 : vector<8x32xf32>
    %cst_47 = arith.constant 5.000000e-01 : f32
    %141 = vector.broadcast %cst_47 : f32 to vector<8x32xf32>
    %142 = arith.addf %140, %141 : vector<8x32xf32>
    %143 = vector.extract_strided_slice %137 {offsets = [0, 32], sizes = [8, 32], strides = [1, 1]} : vector<8x128xf32> to vector<8x32xf32>
    %cst_48 = arith.constant 5.000000e-01 : f32
    %144 = vector.broadcast %cst_48 : f32 to vector<8x32xf32>
    %145 = arith.mulf %144, %143 : vector<8x32xf32>
    %cst_49 = arith.constant 5.000000e-01 : f32
    %146 = vector.broadcast %cst_49 : f32 to vector<8x32xf32>
    %147 = arith.addf %145, %146 : vector<8x32xf32>
    %148 = vector.extract_strided_slice %137 {offsets = [0, 64], sizes = [8, 32], strides = [1, 1]} : vector<8x128xf32> to vector<8x32xf32>
    %149 = vector.extract_strided_slice %137 {offsets = [0, 96], sizes = [8, 32], strides = [1, 1]} : vector<8x128xf32> to vector<8x32xf32>
    %cst_50 = arith.constant 5.000000e-01 : f32
    %150 = vector.broadcast %cst_50 : f32 to vector<8x32xf32>
    %151 = arith.mulf %150, %149 : vector<8x32xf32>
    %cst_51 = arith.constant 5.000000e-01 : f32
    %152 = vector.broadcast %cst_51 : f32 to vector<8x32xf32>
    %153 = arith.addf %151, %152 : vector<8x32xf32>
    %154 = arith.mulf %147, %131 : vector<8x32xf32>
    %155 = arith.mulf %142, %148 : vector<8x32xf32>
    %156 = arith.addf %154, %155 : vector<8x32xf32>
    %157 = math.tanh %156 : vector<8x32xf32>
    %158 = arith.mulf %153, %157 : vector<8x32xf32>
    %159 = vector.extract_strided_slice %5 {offsets = [48, 0], sizes = [8, 128], strides = [1, 1]} : vector<64x128xf32> to vector<8x128xf32>
    %cst_52 = arith.constant dense<0.000000e+00> : vector<8x128xf32>
    %160 = tpu.matmul %158, %6, %cst_52 {dimension_numbers = #tpu.dot_dimension_numbers<[1], [0], [0], [1], [0, 0, 1, 1], [], []>} : vector<8x32xf32>, vector<32x128xf32>, vector<8x128xf32> -> vector<8x128xf32>
    %161 = arith.addf %159, %160 : vector<8x128xf32>
    %162 = math.tanh %161 : vector<8x128xf32>
    %163 = vector.extract_strided_slice %162 {offsets = [0, 0], sizes = [8, 32], strides = [1, 1]} : vector<8x128xf32> to vector<8x32xf32>
    %cst_53 = arith.constant 5.000000e-01 : f32
    %164 = vector.broadcast %cst_53 : f32 to vector<8x32xf32>
    %165 = arith.mulf %164, %163 : vector<8x32xf32>
    %cst_54 = arith.constant 5.000000e-01 : f32
    %166 = vector.broadcast %cst_54 : f32 to vector<8x32xf32>
    %167 = arith.addf %165, %166 : vector<8x32xf32>
    %168 = vector.extract_strided_slice %162 {offsets = [0, 32], sizes = [8, 32], strides = [1, 1]} : vector<8x128xf32> to vector<8x32xf32>
    %cst_55 = arith.constant 5.000000e-01 : f32
    %169 = vector.broadcast %cst_55 : f32 to vector<8x32xf32>
    %170 = arith.mulf %169, %168 : vector<8x32xf32>
    %cst_56 = arith.constant 5.000000e-01 : f32
    %171 = vector.broadcast %cst_56 : f32 to vector<8x32xf32>
    %172 = arith.addf %170, %171 : vector<8x32xf32>
    %173 = vector.extract_strided_slice %162 {offsets = [0, 64], sizes = [8, 32], strides = [1, 1]} : vector<8x128xf32> to vector<8x32xf32>
    %174 = vector.extract_strided_slice %162 {offsets = [0, 96], sizes = [8, 32], strides = [1, 1]} : vector<8x128xf32> to vector<8x32xf32>
    %cst_57 = arith.constant 5.000000e-01 : f32
    %175 = vector.broadcast %cst_57 : f32 to vector<8x32xf32>
    %176 = arith.mulf %175, %174 : vector<8x32xf32>
    %cst_58 = arith.constant 5.000000e-01 : f32
    %177 = vector.broadcast %cst_58 : f32 to vector<8x32xf32>
    %178 = arith.addf %176, %177 : vector<8x32xf32>
    %179 = arith.mulf %172, %156 : vector<8x32xf32>
    %180 = arith.mulf %167, %173 : vector<8x32xf32>
    %181 = arith.addf %179, %180 : vector<8x32xf32>
    %182 = math.tanh %181 : vector<8x32xf32>
    %183 = arith.mulf %178, %182 : vector<8x32xf32>
    %184 = vector.extract_strided_slice %5 {offsets = [56, 0], sizes = [8, 128], strides = [1, 1]} : vector<64x128xf32> to vector<8x128xf32>
    %cst_59 = arith.constant dense<0.000000e+00> : vector<8x128xf32>
    %185 = tpu.matmul %183, %6, %cst_59 {dimension_numbers = #tpu.dot_dimension_numbers<[1], [0], [0], [1], [0, 0, 1, 1], [], []>} : vector<8x32xf32>, vector<32x128xf32>, vector<8x128xf32> -> vector<8x128xf32>
    %186 = arith.addf %184, %185 : vector<8x128xf32>
    %187 = math.tanh %186 : vector<8x128xf32>
    %188 = vector.extract_strided_slice %187 {offsets = [0, 0], sizes = [8, 32], strides = [1, 1]} : vector<8x128xf32> to vector<8x32xf32>
    %cst_60 = arith.constant 5.000000e-01 : f32
    %189 = vector.broadcast %cst_60 : f32 to vector<8x32xf32>
    %190 = arith.mulf %189, %188 : vector<8x32xf32>
    %cst_61 = arith.constant 5.000000e-01 : f32
    %191 = vector.broadcast %cst_61 : f32 to vector<8x32xf32>
    %192 = arith.addf %190, %191 : vector<8x32xf32>
    %193 = vector.extract_strided_slice %187 {offsets = [0, 32], sizes = [8, 32], strides = [1, 1]} : vector<8x128xf32> to vector<8x32xf32>
    %cst_62 = arith.constant 5.000000e-01 : f32
    %194 = vector.broadcast %cst_62 : f32 to vector<8x32xf32>
    %195 = arith.mulf %194, %193 : vector<8x32xf32>
    %cst_63 = arith.constant 5.000000e-01 : f32
    %196 = vector.broadcast %cst_63 : f32 to vector<8x32xf32>
    %197 = arith.addf %195, %196 : vector<8x32xf32>
    %198 = vector.extract_strided_slice %187 {offsets = [0, 64], sizes = [8, 32], strides = [1, 1]} : vector<8x128xf32> to vector<8x32xf32>
    %199 = vector.extract_strided_slice %187 {offsets = [0, 96], sizes = [8, 32], strides = [1, 1]} : vector<8x128xf32> to vector<8x32xf32>
    %cst_64 = arith.constant 5.000000e-01 : f32
    %200 = vector.broadcast %cst_64 : f32 to vector<8x32xf32>
    %201 = arith.mulf %200, %199 : vector<8x32xf32>
    %cst_65 = arith.constant 5.000000e-01 : f32
    %202 = vector.broadcast %cst_65 : f32 to vector<8x32xf32>
    %203 = arith.addf %201, %202 : vector<8x32xf32>
    %204 = arith.mulf %197, %181 : vector<8x32xf32>
    %205 = arith.mulf %192, %198 : vector<8x32xf32>
    %206 = arith.addf %204, %205 : vector<8x32xf32>
    %207 = math.tanh %206 : vector<8x32xf32>
    %208 = arith.mulf %203, %207 : vector<8x32xf32>
    %c0_66 = arith.constant 0 : index
    %c0_67 = arith.constant 0 : index
    %209 = vector.load %arg7[%c0_66, %c0_67] : memref<8x32xf32, #tpu.memory_space<vmem>>, vector<8x32xf32>
    tpu.vector_store %arg7[%c0_66, %c0_67], %208 {strides = array<i32>} : memref<8x32xf32, #tpu.memory_space<vmem>>, vector<8x32xf32>,
    %c0_68 = arith.constant 0 : index
    %c0_69 = arith.constant 0 : index
    %210 = vector.load %arg8[%c0_68, %c0_69] : memref<8x32xf32, #tpu.memory_space<vmem>>, vector<8x32xf32>
    tpu.vector_store %arg8[%c0_68, %c0_69], %206 {strides = array<i32>} : memref<8x32xf32, #tpu.memory_space<vmem>>, vector<8x32xf32>,
    %211 = tpu.concatenate %33, %58, %83, %108, %133, %158, %183, %208 in 1 : vector<8x32xf32>, vector<8x32xf32>, vector<8x32xf32>, vector<8x32xf32>, vector<8x32xf32>, vector<8x32xf32>, vector<8x32xf32>, vector<8x32xf32> -> vector<8x256xf32>
    %c0_70 = arith.constant 0 : index
    %c0_71 = arith.constant 0 : index
    %212 = vector.load %arg6[%c0_70, %c0_71] : memref<8x256xf32, #tpu.memory_space<vmem>>, vector<8x256xf32>
    tpu.vector_store %arg6[%c0_70, %c0_71], %211 {strides = array<i32>} : memref<8x256xf32, #tpu.memory_space<vmem>>, vector<8x256xf32>,
    return
  }
  func.func @transform_0(%arg0: i32) -> (i32, i32) {
    %c0_i32 = arith.constant 0 : i32
    %c0_i32_0 = arith.constant 0 : i32
    return %arg0, %c0_i32 : i32, i32
  }
  func.func @transform_1(%arg0: i32) -> (i32, i32) {
    %c0_i32 = arith.constant 0 : i32
    %c0_i32_0 = arith.constant 0 : i32
    %c0_i32_1 = arith.constant 0 : i32
    return %c0_i32, %c0_i32_0 : i32, i32
  }
  func.func @transform_2(%arg0: i32) -> (i32, i32) {
    %c0_i32 = arith.constant 0 : i32
    %c0_i32_0 = arith.constant 0 : i32
    %c0_i32_1 = arith.constant 0 : i32
    return %c0_i32, %c0_i32_0 : i32, i32
  }
  func.func @transform_3(%arg0: i32) -> (i32, i32) {
    %c0_i32 = arith.constant 0 : i32
    %c0_i32_0 = arith.constant 0 : i32
    %c0_i32_1 = arith.constant 0 : i32
    return %c0_i32, %c0_i32_0 : i32, i32
  }
  func.func @transform_4(%arg0: i32) -> (i32, i32) {
    %c0_i32 = arith.constant 0 : i32
    %c0_i32_0 = arith.constant 0 : i32
    %c0_i32_1 = arith.constant 0 : i32
    return %c0_i32, %c0_i32_0 : i32, i32
  }
  func.func @transform_5(%arg0: i32) -> (i32, i32) {
    %c0_i32 = arith.constant 0 : i32
    %c0_i32_0 = arith.constant 0 : i32
    return %c0_i32, %arg0 : i32, i32
  }
}

</mosaic_0001>

<llo_original>
// kernel: tpu_custom_call.1
$region0: #{tpu_custom_call.1}
  #allocation0 [shape = 'u32[]', space=smem, size = 0x4, offset = 0x4, fixed_abs, tag = 'smem constant byte address 0x4 - core index']
  #allocation1 [shape = 'u32[144,128]{1,0:T(1,128)}', space=vmem, size = 0x12000, scoped, tag = 'internal scratch']
  #allocation2 [shape = 'f32[8,32]{1,0:T(8,128)}', space=vmem, size = 0x1000, scoped, tag = 'scratch operand']
  #allocation3 [shape = 'f32[8,32]{1,0:T(8,128)}', space=vmem, size = 0x1000, scoped, tag = 'scratch operand']
  %s0 = inlined_call_operand.vmem [shape: f32[128,3], index: 0, kind: input, shape index: {}]
  %s1 = inlined_call_operand.vmem [shape: f32[3,128], index: 1, kind: input, shape index: {}]
  %s2 = inlined_call_operand.vmem [shape: f32[32,128], index: 2, kind: input, shape index: {}]
  %s3 = inlined_call_operand.vmem [shape: f32[8,32], index: 3, kind: input, shape index: {}]
  %s4 = inlined_call_operand.vmem [shape: f32[8,32], index: 4, kind: input, shape index: {}]
  %s5 = inlined_call_operand.hbm [shape: f32[8,512], index: 5, kind: output, shape index: {}]
  %s6 = sld [smem:[#allocation0]]
  $region57: #{tpu_custom_call.1} parent=0
    _
  %s8 = ssub.s32 1, %s6
  %s9 = scalar_select 0, %s8, %s6
  $region1: #{tpu_custom_call.1} parent=0
    #allocation4 [shape = 'u8[16384]{0}', space=vmem, size = 0x4000, scoped, tag = 'output window, operand 0']
    #allocation5 [shape = 's32[2]{0}', space=sflag, size = 0x8, scoped, tag = 'scoped memory for tpu_custom_call.1']
    %10 = vsyncpa [#allocation5], 0
    %s11 = scalar_lea.sflag [#allocation5], 1
    %12 = vsyncpa %s11, 0
    loop: start=0, step=1, limit=4
    $region2: #{tpu_custom_call.1} parent=1 // loop_pre_header
      _
    $region3: #{tpu_custom_call.1} parent=1 // loop_header
      %s14 = sphi 0, %s18
      %p15 = scmp.ge.s32.totalorder %s14, 4
      %s24 = sphi 0, %s26
      %s27 = sphi 0, %s24
      %s28 = sphi 0, %s27
      %s44 = sphi 0, %s28
      %s48 = sphi 0, %s48
      %s50 = sphi 0, %s48
      %s51 = sphi 0, %s50
      %s65 = sphi 0, %s51
      %s69 = sphi 0, %s69
      %s71 = sphi 0, %s69
      %s72 = sphi 0, %s71
      %s86 = sphi 0, %s72
      %s90 = sphi 0, %s90
      %s92 = sphi 0, %s90
      %s93 = sphi 0, %s92
      %s107 = sphi 0, %s93
      %s111 = sphi 0, %s111
      %s113 = sphi 0, %s111
      %s114 = sphi 0, %s113
      %s128 = sphi 0, %s114
      %s134 = sphi 0, %s136
      %s137 = sphi 0, %s134
      %s138 = sphi 0, %s137
      %s154 = sphi 0, %s138
    $region4: #{tpu_custom_call.1} parent=1 // loop_header_branch
      %17 = sbr.rel (%p15) target = $region8
    $region5: #{tpu_custom_call.1} parent=1 // loop_body
      %s19 = ssub.s32 %s14, 1
      %s20 = ssub.s32 %s14, 2
      %s21 = sadd.s32 %s14, 1
      %s22 = ssub.s32 %s14, %s21
      %p23 = scmp.eq.s32.totalorder %s22, 0
      %s25 = sadd.s32 %s24, 1
      %s26 = scalar_select %p23, %s24, %s25
      %p29 = pneg %p23
      %p30 = scmp.eq.s32.totalorder %s14, 1
      %p31 = por %p29, %p30
      %p32 = scmp.ne.s32.totalorder %s24, %s27
      %p33 = scmp.eq.s32.totalorder %s14, 0
      %p34 = por %p32, %p33
      %p35 = scmp.ne.s32.totalorder %s24, %s27
      %p36 = scmp.eq.s32.totalorder %s19, 1
      %p37 = por %p35, %p36
      %p38 = scmp.ne.s32.totalorder %s27, %s28
      %p39 = scmp.eq.s32.totalorder %s19, 0
      %p40 = por %p38, %p39
      %p41 = scmp.ne.s32.totalorder %s27, %s28
      %p42 = scmp.eq.s32.totalorder %s20, 1
      %p43 = por %p41, %p42
      %p45 = scmp.ne.s32.totalorder %s28, %s44
      %p46 = scmp.eq.s32.totalorder %s20, 0
      %p47 = por %p45, %p46
      %s49 = sadd.s32 %s48, 1
      %p52 = scmp.eq.s32.totalorder %s14, 1
      %p53 = scmp.ne.s32.totalorder %s48, %s50
      %p54 = scmp.eq.s32.totalorder %s14, 0
      %p55 = por %p53, %p54
      %p56 = scmp.ne.s32.totalorder %s48, %s50
      %p57 = scmp.eq.s32.totalorder %s19, 1
      %p58 = por %p56, %p57
      %p59 = scmp.ne.s32.totalorder %s50, %s51
      %p60 = scmp.eq.s32.totalorder %s19, 0
      %p61 = por %p59, %p60
      %p62 = scmp.ne.s32.totalorder %s50, %s51
      %p63 = scmp.eq.s32.totalorder %s20, 1
      %p64 = por %p62, %p63
      %p66 = scmp.ne.s32.totalorder %s51, %s65
      %p67 = scmp.eq.s32.totalorder %s20, 0
      %p68 = por %p66, %p67
      %s70 = sadd.s32 %s69, 1
      %p73 = scmp.eq.s32.totalorder %s14, 1
      %p74 = scmp.ne.s32.totalorder %s69, %s71
      %p75 = scmp.eq.s32.totalorder %s14, 0
      %p76 = por %p74, %p75
      %p77 = scmp.ne.s32.totalorder %s69, %s71
      %p78 = scmp.eq.s32.totalorder %s19, 1
      %p79 = por %p77, %p78
      %p80 = scmp.ne.s32.totalorder %s71, %s72
      %p81 = scmp.eq.s32.totalorder %s19, 0
      %p82 = por %p80, %p81
      %p83 = scmp.ne.s32.totalorder %s71, %s72
      %p84 = scmp.eq.s32.totalorder %s20, 1
      %p85 = por %p83, %p84
      %p87 = scmp.ne.s32.totalorder %s72, %s86
      %p88 = scmp.eq.s32.totalorder %s20, 0
      %p89 = por %p87, %p88
      %s91 = sadd.s32 %s90, 1
      %p94 = scmp.eq.s32.totalorder %s14, 1
      %p95 = scmp.ne.s32.totalorder %s90, %s92
      %p96 = scmp.eq.s32.totalorder %s14, 0
      %p97 = por %p95, %p96
      %p98 = scmp.ne.s32.totalorder %s90, %s92
      %p99 = scmp.eq.s32.totalorder %s19, 1
      %p100 = por %p98, %p99
      %p101 = scmp.ne.s32.totalorder %s92, %s93
      %p102 = scmp.eq.s32.totalorder %s19, 0
      %p103 = por %p101, %p102
      %p104 = scmp.ne.s32.totalorder %s92, %s93
      %p105 = scmp.eq.s32.totalorder %s20, 1
      %p106 = por %p104, %p105
      %p108 = scmp.ne.s32.totalorder %s93, %s107
      %p109 = scmp.eq.s32.totalorder %s20, 0
      %p110 = por %p108, %p109
      %s112 = sadd.s32 %s111, 1
      %p115 = scmp.eq.s32.totalorder %s14, 1
      %p116 = scmp.ne.s32.totalorder %s111, %s113
      %p117 = scmp.eq.s32.totalorder %s14, 0
      %p118 = por %p116, %p117
      %p119 = scmp.ne.s32.totalorder %s111, %s113
      %p120 = scmp.eq.s32.totalorder %s19, 1
      %p121 = por %p119, %p120
      %p122 = scmp.ne.s32.totalorder %s113, %s114
      %p123 = scmp.eq.s32.totalorder %s19, 0
      %p124 = por %p122, %p123
      %p125 = scmp.ne.s32.totalorder %s113, %s114
      %p126 = scmp.eq.s32.totalorder %s20, 1
      %p127 = por %p125, %p126
      %p129 = scmp.ne.s32.totalorder %s114, %s128
      %p130 = scmp.eq.s32.totalorder %s20, 0
      %p131 = por %p129, %p130
      %s132 = ssub.s32 %s14, %s21
      %p133 = scmp.eq.s32.totalorder %s132, 0
      %s135 = sadd.s32 %s134, 1
      %s136 = scalar_select %p133, %s134, %s135
      %p139 = pneg %p133
      %p140 = scmp.eq.s32.totalorder %s14, 1
      %p141 = por %p139, %p140
      %p142 = scmp.ne.s32.totalorder %s134, %s137
      %p143 = scmp.eq.s32.totalorder %s14, 0
      %p144 = por %p142, %p143
      %p145 = scmp.ne.s32.totalorder %s134, %s137
      %p146 = scmp.eq.s32.totalorder %s19, 1
      %p147 = por %p145, %p146
      %p148 = scmp.ne.s32.totalorder %s137, %s138
      %p149 = scmp.eq.s32.totalorder %s19, 0
      %p150 = por %p148, %p149
      %p151 = scmp.ne.s32.totalorder %s137, %s138
      %p152 = scmp.eq.s32.totalorder %s20, 1
      %p153 = por %p151, %p152
      %p155 = scmp.ne.s32.totalorder %s138, %s154
      %p156 = scmp.eq.s32.totalorder %s20, 0
      %p157 = por %p155, %p156
      %p158 = scmp.le.s32.totalorder 1, %s14
      %p159 = scmp.lt.s32.totalorder %s14, 3
      %p160 = pnand %p158, %p159
      %p161 = pneg %p160
      // Predicated region
      $region9: #{tpu_custom_call.1} parent=5 // pred_check
        _
      $region10: #{tpu_custom_call.1} parent=5 // pred_check_branch
        %163 = sbr.rel (%p160) target = $region12
      $region11: #{tpu_custom_call.1} parent=5 // pred_region
        %s164 = ssub.s32 %s14, 1
        // Predicated region
        $region13: #{tpu_custom_call.1} parent=11 // pred_check
          %p165 = pneg %p61
        $region14: #{tpu_custom_call.1} parent=11 // pred_check_branch
          %167 = sbr.rel (%p165) target = $region16
        $region15: #{tpu_custom_call.1} parent=11 // pred_region
          _
        $region16: #{tpu_custom_call.1} parent=11 // pred_fallthru
          _
        // Predicated region
        $region17: #{tpu_custom_call.1} parent=11 // pred_check
          %p168 = pneg %p82
        $region18: #{tpu_custom_call.1} parent=11 // pred_check_branch
          %170 = sbr.rel (%p168) target = $region20
        $region19: #{tpu_custom_call.1} parent=11 // pred_region
          _
        $region20: #{tpu_custom_call.1} parent=11 // pred_fallthru
          _
        // Predicated region
        $region21: #{tpu_custom_call.1} parent=11 // pred_check
          %p171 = pneg %p103
        $region22: #{tpu_custom_call.1} parent=11 // pred_check_branch
          %173 = sbr.rel (%p171) target = $region24
        $region23: #{tpu_custom_call.1} parent=11 // pred_region
          _
        $region24: #{tpu_custom_call.1} parent=11 // pred_fallthru
          _
        // Predicated region
        $region25: #{tpu_custom_call.1} parent=11 // pred_check
          %p174 = pneg %p124
        $region26: #{tpu_custom_call.1} parent=11 // pred_check_branch
          %176 = sbr.rel (%p174) target = $region28
        $region27: #{tpu_custom_call.1} parent=11 // pred_region
          _
        $region28: #{tpu_custom_call.1} parent=11 // pred_fallthru
          _
      $region12: #{tpu_custom_call.1} parent=5 // pred_fallthru
        _
      %p177 = scmp.lt.s32.totalorder %s14, 2
      // Predicated region
      $region29: #{tpu_custom_call.1} parent=5 // pred_check
        %p178 = pneg %p177
      $region30: #{tpu_custom_call.1} parent=5 // pred_check_branch
        %180 = sbr.rel (%p178) target = $region32
      $region31: #{tpu_custom_call.1} parent=5 // pred_region
        // Predicated region
        $region33: #{tpu_custom_call.1} parent=31 // pred_check
          %p181 = pneg %p34
        $region34: #{tpu_custom_call.1} parent=31 // pred_check_branch
          %183 = sbr.rel (%p181) target = $region36
        $region35: #{tpu_custom_call.1} parent=31 // pred_region
          %s184 = smul.u32 8, %s14
          %p185 = scmp.lt.s32.totalorder %s184, 15
          %s186 = scalar_select %p185, %s184, 15
          %s187 = smul.addr %s186, 8
          %s188 = scalar_lea.vmem %s0, %s187
          %s189 = smul.u32 8, %s14
        $region36: #{tpu_custom_call.1} parent=31 // pred_fallthru
          _
      $region32: #{tpu_custom_call.1} parent=5 // pred_fallthru
        _
      %p190 = scmp.le.s32.totalorder 1, %s14
      %p191 = scmp.lt.s32.totalorder %s14, 3
      %p192 = pnand %p190, %p191
      %p193 = pneg %p192
      // Predicated region
      $region37: #{tpu_custom_call.1} parent=5 // pred_check
        _
      $region38: #{tpu_custom_call.1} parent=5 // pred_check_branch
        %195 = sbr.rel (%p192) target = $region40
      $region39: #{tpu_custom_call.1} parent=5 // pred_region
        %s196 = ssub.s32 %s14, 1
        %s197 = smul.u32 8, %s19
        %p198 = scmp.lt.s32.totalorder %s197, 15
        %s199 = scalar_select %p198, %s197, 15
        %s200 = smul.addr %s199, 8
        %s201 = scalar_lea.vmem %s0, %s200
        %p202 = pneg %p40
        %p203 = pneg %p37
        %p204 = pneg %p61
        %p205 = pneg %p58
        %p206 = pneg %p82
        %p207 = pneg %p79
        %p208 = pneg %p103
        %p209 = pneg %p100
        %p210 = pneg %p124
        %p211 = pneg %p121
        %p212 = pneg %p150
        %p213 = pneg %p147
        %s214 = sand.u32 %s137, 1
        %s215 = scalar_lea.sflag [#allocation5], %s214
        %s216 = sand.u32 %s137, 1
        %s217 = smul.addr %s216, 16
        %s218 = scalar_lea.vmem [#allocation4], %s217
        %s219 = smul.u32 8, %s19
        %p220 = scmp.lt.s32.totalorder %s219, 15
        %s221 = scalar_select %p220, %s219, 15
        %s222 = smul.addr %s221, 8
        %s223 = scalar_lea.vmem %s0, %s222
        %s224 = smul.u32 8, %s19
        %s225 = smul.u32 2, %s19
        %p226 = scmp.eq.s32.totalorder %s19, 0
        // Predicated region
        $region41: #{tpu_custom_call.1} parent=39 // pred_check
          %p227 = pneg %p226
        $region42: #{tpu_custom_call.1} parent=39 // pred_check_branch
          %229 = sbr.rel (%p227) target = $region44
        $region43: #{tpu_custom_call.1} parent=39 // pred_region
          %v230 = vld [vmem:[%s3] sm:$0xff]
          %vm231 = vcmask 261120
          %232 = vst.msk [vmem:[#allocation2] sm:$0xff] %vm231, %v230
          %v233 = vld [vmem:[%s4] sm:$0xff]
          %234 = vst.msk [vmem:[#allocation3] sm:$0xff] %vm231, %v233
        $region44: #{tpu_custom_call.1} parent=39 // pred_fallthru
          _
        %v235 = vld [vmem:[%s223] sm:$0xff]
        %v236 = vld [vmem:[%s223 + $0x8] sm:$0xff]
        %v237 = vld [vmem:[%s223 + $0x10] sm:$0xff]
        %v238 = vld [vmem:[%s223 + $0x18] sm:$0xff]
        %v239 = vld [vmem:[%s223 + $0x20] sm:$0xff]
        %v240 = vld [vmem:[%s223 + $0x28] sm:$0xff]
        %v241 = vld [vmem:[%s223 + $0x30] sm:$0xff]
        %v242 = vld [vmem:[%s223 + $0x38] sm:$0xff]
        %v243 = vld [vmem:[%s1] sm:$0x7]
        %vm244 = vcmask 23552
        %v246 = vsel %vm244, %v235, 0
        %v249 = vsel %vm244, %v236, 0
        %v252 = vsel %vm244, %v237, 0
        %v255 = vsel %vm244, %v238, 0
        %v258 = vsel %vm244, %v239, 0
        %v261 = vsel %vm244, %v240, 0
        %v264 = vsel %vm244, %v241, 0
        %v267 = vsel %vm244, %v242, 0
        %vm269 = vcmask 1042432
        %v271 = vsel %vm269, %v243, 0
        %273 = vmatprep.subr.mxu0 0.0
        %274 = vmatpush1.msra.mxu0 %v271
        %275 = vmatprep.subr.mxu0 0.0
        %276 = vmatpush1.msra.mxu0 0.0
        %277 = vmatprep.subr.mxu0 0.0
        %278 = vmatpush1.msra.mxu0 0.0
        %279 = vmatprep.subr.mxu0 0.0
        %280 = vmatpush1.msra.mxu0 0.0
        %281 = vmatprep.subr.mxu0 0.0
        %282 = vmatpush1.msra.mxu0 0.0
        %283 = vmatprep.subr.mxu0 0.0
        %284 = vmatpush1.msra.mxu0 0.0
        %285 = vmatprep.subr.mxu0 0.0
        %286 = vmatpush1.msra.mxu0 0.0
        %287 = vmatprep.subr.mxu0 0.0
        %288 = vmatpush1.msra.mxu0 0.0
        %289 = vmatprep.subr.mxu0 0.0
        %290 = vmatpush1.msra.mxu0 0.0
        %291 = vmatprep.subr.mxu0 0.0
        %292 = vmatpush1.msra.mxu0 0.0
        %293 = vmatprep.subr.mxu0 0.0
        %294 = vmatpush1.msra.mxu0 0.0
        %295 = vmatprep.subr.mxu0 0.0
        %296 = vmatpush1.msra.mxu0 0.0
        %297 = vmatprep.subr.mxu0 0.0
        %298 = vmatpush1.msra.mxu0 0.0
        %299 = vmatprep.subr.mxu0 0.0
        %300 = vmatpush1.msra.mxu0 0.0
        %301 = vmatprep.subr.mxu0 0.0
        %302 = vmatpush1.msra.mxu0 0.0
        %303 = vmatprep.subr.mxu0 0.0
        %304 = vmatpush1.msra.mxu0 0.0
        %305 = vmatprep.subr.mxu0 0.0
        %306 = vmatpush1.msra.mxu0 0.0
        %307 = vmatprep.subr.mxu0 0.0
        %308 = vmatpush1.msra.mxu0 0.0
        %309 = vmatprep.subr.mxu0 0.0
        %310 = vmatpush1.msra.mxu0 0.0
        %311 = vmatprep.subr.mxu0 0.0
        %312 = vmatpush1.msra.mxu0 0.0
        %313 = vmatprep.subr.mxu0 0.0
        %314 = vmatpush1.msra.mxu0 0.0
        %315 = vmatprep.subr.mxu0 0.0
        %316 = vmatpush1.msra.mxu0 0.0
        %317 = vmatprep.subr.mxu0 0.0
        %318 = vmatpush1.msra.mxu0 0.0
        %319 = vmatprep.subr.mxu0 0.0
        %320 = vmatpush1.msra.mxu0 0.0
        %321 = vmatprep.subr.mxu0 0.0
        %322 = vmatpush1.msra.mxu0 0.0
        %323 = vmatprep.subr.mxu0 0.0
        %324 = vmatpush1.msra.mxu0 0.0
        %325 = vmatprep.subr.mxu0 0.0
        %326 = vmatpush1.msra.mxu0 0.0
        %327 = vmatprep.subr.mxu0 0.0
        %328 = vmatpush1.msra.mxu0 0.0
        %329 = vmatprep.subr.mxu0 0.0
        %330 = vmatpush1.msra.mxu0 0.0
        %331 = vmatprep.subr.mxu0 0.0
        %332 = vmatpush1.msra.mxu0 0.0
        %333 = vmatprep.subr.mxu0 0.0
        %334 = vmatpush1.msra.mxu0 0.0
        %335 = vmatprep.subr.mxu0 0.0
        %336 = vmatpush1.msra.mxu0 0.0
        %337 = vmatprep.mubr.f32.mxu0 0.0
        %338 = vmatmul.mubr.f32.gmra.mrb[0].mxu0 %v246
        %v339 = vpop.f32.mrb[0].mxu0
        %v340 = vadd.f32 0.0, %v339
        %v341 = vpop.f32.mrb[0].mxu0
        %342 = vmatprep.mubr.f32.mxu0 0.0
        %343 = vmatmul.mubr.f32.gmra.mrb[0].mxu0 %v249
        %v344 = vpop.f32.mrb[0].mxu0
        %v345 = vadd.f32 0.0, %v344
        %v346 = vpop.f32.mrb[0].mxu0
        %347 = vmatprep.mubr.f32.mxu0 0.0
        %348 = vmatmul.mubr.f32.gmra.mrb[0].mxu0 %v252
        %v349 = vpop.f32.mrb[0].mxu0
        %v350 = vadd.f32 0.0, %v349
        %v351 = vpop.f32.mrb[0].mxu0
        %352 = vmatprep.mubr.f32.mxu0 0.0
        %353 = vmatmul.mubr.f32.gmra.mrb[0].mxu0 %v255
        %v354 = vpop.f32.mrb[0].mxu0
        %v355 = vadd.f32 0.0, %v354
        %v356 = vpop.f32.mrb[0].mxu0
        %357 = vmatprep.mubr.f32.mxu0 0.0
        %358 = vmatmul.mubr.f32.gmra.mrb[0].mxu0 %v258
        %v359 = vpop.f32.mrb[0].mxu0
        %v360 = vadd.f32 0.0, %v359
        %v361 = vpop.f32.mrb[0].mxu0
        %362 = vmatprep.mubr.f32.mxu0 0.0
        %363 = vmatmul.mubr.f32.gmra.mrb[0].mxu0 %v261
        %v364 = vpop.f32.mrb[0].mxu0
        %v365 = vadd.f32 0.0, %v364
        %v366 = vpop.f32.mrb[0].mxu0
        %367 = vmatprep.mubr.f32.mxu0 0.0
        %368 = vmatmul.mubr.f32.gmra.mrb[0].mxu0 %v264
        %v369 = vpop.f32.mrb[0].mxu0
        %v370 = vadd.f32 0.0, %v369
        %v371 = vpop.f32.mrb[0].mxu0
        %372 = vmatprep.mubr.f32.mxu0 0.0
        %373 = vmatmul.mubr.f32.gmra.mrb[0].mxu0 %v267
        %v374 = vpop.f32.mrb[0].mxu0
        %v375 = vadd.f32 0.0, %v374
        %v376 = vpop.f32.mrb[0].mxu0
        %377 = vdwg.mxu0
        %v378 = vld [vmem:[%s2] sm:$0xff]
        %v379 = vld [vmem:[%s2 + $0x8] sm:$0xff]
        %v380 = vld [vmem:[%s2 + $0x10] sm:$0xff]
        %v381 = vld [vmem:[%s2 + $0x18] sm:$0xff]
        %v382 = vld [vmem:[#allocation2] sm:$0xff]
        %v383 = vld [vmem:[#allocation3] sm:$0xff]
        %vm384 = vcmask 261120
        %v386 = vsel %vm384, %v382, 0
        %388 = vmatprep.subr.mxu0 0.0
        %389 = vmatpush1.msra.mxu0 %v378
        %390 = vmatprep.subr.mxu0 0.0
        %391 = vmatpush1.msra.mxu0 %v379
        %392 = vmatprep.subr.mxu0 0.0
        %393 = vmatpush1.msra.mxu0 %v380
        %394 = vmatprep.subr.mxu0 0.0
        %395 = vmatpush1.msra.mxu0 %v381
        %396 = vmatprep.subr.mxu0 0.0
        %397 = vmatpush1.msra.mxu0 0.0
        %398 = vmatprep.subr.mxu0 0.0
        %399 = vmatpush1.msra.mxu0 0.0
        %400 = vmatprep.subr.mxu0 0.0
        %401 = vmatpush1.msra.mxu0 0.0
        %402 = vmatprep.subr.mxu0 0.0
        %403 = vmatpush1.msra.mxu0 0.0
        %404 = vmatprep.subr.mxu0 0.0
        %405 = vmatpush1.msra.mxu0 0.0
        %406 = vmatprep.subr.mxu0 0.0
        %407 = vmatpush1.msra.mxu0 0.0
        %408 = vmatprep.subr.mxu0 0.0
        %409 = vmatpush1.msra.mxu0 0.0
        %410 = vmatprep.subr.mxu0 0.0
        %411 = vmatpush1.msra.mxu0 0.0
        %412 = vmatprep.subr.mxu0 0.0
        %413 = vmatpush1.msra.mxu0 0.0
        %414 = vmatprep.subr.mxu0 0.0
        %415 = vmatpush1.msra.mxu0 0.0
        %416 = vmatprep.subr.mxu0 0.0
        %417 = vmatpush1.msra.mxu0 0.0
        %418 = vmatprep.subr.mxu0 0.0
        %419 = vmatpush1.msra.mxu0 0.0
        %420 = vmatprep.subr.mxu0 0.0
        %421 = vmatpush1.msra.mxu0 0.0
        %422 = vmatprep.subr.mxu0 0.0
        %423 = vmatpush1.msra.mxu0 0.0
        %424 = vmatprep.subr.mxu0 0.0
        %425 = vmatpush1.msra.mxu0 0.0
        %426 = vmatprep.subr.mxu0 0.0
        %427 = vmatpush1.msra.mxu0 0.0
        %428 = vmatprep.subr.mxu0 0.0
        %429 = vmatpush1.msra.mxu0 0.0
        %430 = vmatprep.subr.mxu0 0.0
        %431 = vmatpush1.msra.mxu0 0.0
        %432 = vmatprep.subr.mxu0 0.0
        %433 = vmatpush1.msra.mxu0 0.0
        %434 = vmatprep.subr.mxu0 0.0
        %435 = vmatpush1.msra.mxu0 0.0
        %436 = vmatprep.subr.mxu0 0.0
        %437 = vmatpush1.msra.mxu0 0.0
        %438 = vmatprep.subr.mxu0 0.0
        %439 = vmatpush1.msra.mxu0 0.0
        %440 = vmatprep.subr.mxu0 0.0
        %441 = vmatpush1.msra.mxu0 0.0
        %442 = vmatprep.subr.mxu0 0.0
        %443 = vmatpush1.msra.mxu0 0.0
        %444 = vmatprep.subr.mxu0 0.0
        %445 = vmatpush1.msra.mxu0 0.0
        %446 = vmatprep.subr.mxu0 0.0
        %447 = vmatpush1.msra.mxu0 0.0
        %448 = vmatprep.subr.mxu0 0.0
        %449 = vmatpush1.msra.mxu0 0.0
        %450 = vmatprep.subr.mxu0 0.0
        %451 = vmatpush1.msra.mxu0 0.0
        %452 = vmatprep.mubr.f32.mxu0 0.0
        %453 = vmatmul.mubr.f32.gmra.mrb[0].mxu0 %v386
        %v454 = vpop.f32.mrb[0].mxu0
        %v455 = vadd.f32 0.0, %v454
        %v456 = vpop.f32.mrb[0].mxu0
        %457 = vdwg.mxu0
        %v458 = vadd.f32 %v340, %v455
        %v459 = vtanh.pop %v458
        %v460 = vmul.f32 %v459, 0.5
        %v461 = vadd.f32 %v460, 0.5
        %463 = vrot.lane.b32.xlu0 %v383, 32
        %v464 = vpop.permute.xlu0 %463
        %v466 = vmul.f32 %v461, %v464
        %468 = vrot.lane.b32.xlu0 %v459, 64
        %v469 = vpop.permute.xlu0 %468
        %v471 = vmul.f32 %v461, %v469
        %473 = vrot.lane.b32.xlu0 %v471, 32
        %v474 = vpop.permute.xlu0 %473
        %v476 = vadd.f32 %v466, %v474
        %v477 = vtanh.pop %v476
        %479 = vrot.lane.b32.xlu0 %v477, 64
        %v480 = vpop.permute.xlu0 %479
        %v482 = vmul.f32 %v461, %v480
        %484 = vrot.lane.b32.xlu0 %v482, 32
        %v485 = vpop.permute.xlu0 %484
        %v486 = vsel %vm384, %v485, 0
        %488 = vmatprep.subr.mxu0 0.0
        %489 = vmatpush1.msra.mxu0 %v378
        %490 = vmatprep.subr.mxu0 0.0
        %491 = vmatpush1.msra.mxu0 %v379
        %492 = vmatprep.subr.mxu0 0.0
        %493 = vmatpush1.msra.mxu0 %v380
        %494 = vmatprep.subr.mxu0 0.0
        %495 = vmatpush1.msra.mxu0 %v381
        %496 = vmatprep.subr.mxu0 0.0
        %497 = vmatpush1.msra.mxu0 0.0
        %498 = vmatprep.subr.mxu0 0.0
        %499 = vmatpush1.msra.mxu0 0.0
        %500 = vmatprep.subr.mxu0 0.0
        %501 = vmatpush1.msra.mxu0 0.0
        %502 = vmatprep.subr.mxu0 0.0
        %503 = vmatpush1.msra.mxu0 0.0
        %504 = vmatprep.subr.mxu0 0.0
        %505 = vmatpush1.msra.mxu0 0.0
        %506 = vmatprep.subr.mxu0 0.0
        %507 = vmatpush1.msra.mxu0 0.0
        %508 = vmatprep.subr.mxu0 0.0
        %509 = vmatpush1.msra.mxu0 0.0
        %510 = vmatprep.subr.mxu0 0.0
        %511 = vmatpush1.msra.mxu0 0.0
        %512 = vmatprep.subr.mxu0 0.0
        %513 = vmatpush1.msra.mxu0 0.0
        %514 = vmatprep.subr.mxu0 0.0
        %515 = vmatpush1.msra.mxu0 0.0
        %516 = vmatprep.subr.mxu0 0.0
        %517 = vmatpush1.msra.mxu0 0.0
        %518 = vmatprep.subr.mxu0 0.0
        %519 = vmatpush1.msra.mxu0 0.0
        %520 = vmatprep.subr.mxu0 0.0
        %521 = vmatpush1.msra.mxu0 0.0
        %522 = vmatprep.subr.mxu0 0.0
        %523 = vmatpush1.msra.mxu0 0.0
        %524 = vmatprep.subr.mxu0 0.0
        %525 = vmatpush1.msra.mxu0 0.0
        %526 = vmatprep.subr.mxu0 0.0
        %527 = vmatpush1.msra.mxu0 0.0
        %528 = vmatprep.subr.mxu0 0.0
        %529 = vmatpush1.msra.mxu0 0.0
        %530 = vmatprep.subr.mxu0 0.0
        %531 = vmatpush1.msra.mxu0 0.0
        %532 = vmatprep.subr.mxu0 0.0
        %533 = vmatpush1.msra.mxu0 0.0
        %534 = vmatprep.subr.mxu0 0.0
        %535 = vmatpush1.msra.mxu0 0.0
        %536 = vmatprep.subr.mxu0 0.0
        %537 = vmatpush1.msra.mxu0 0.0
        %538 = vmatprep.subr.mxu0 0.0
        %539 = vmatpush1.msra.mxu0 0.0
        %540 = vmatprep.subr.mxu0 0.0
        %541 = vmatpush1.msra.mxu0 0.0
        %542 = vmatprep.subr.mxu0 0.0
        %543 = vmatpush1.msra.mxu0 0.0
        %544 = vmatprep.subr.mxu0 0.0
        %545 = vmatpush1.msra.mxu0 0.0
        %546 = vmatprep.subr.mxu0 0.0
        %547 = vmatpush1.msra.mxu0 0.0
        %548 = vmatprep.subr.mxu0 0.0
        %549 = vmatpush1.msra.mxu0 0.0
        %550 = vmatprep.subr.mxu0 0.0
        %551 = vmatpush1.msra.mxu0 0.0
        %552 = vmatprep.mubr.f32.mxu0 0.0
        %553 = vmatmul.mubr.f32.gmra.mrb[0].mxu0 %v486
        %v554 = vpop.f32.mrb[0].mxu0
        %v555 = vadd.f32 0.0, %v554
        %v556 = vpop.f32.mrb[0].mxu0
        %557 = vdwg.mxu0
        %v558 = vadd.f32 %v345, %v555
        %v559 = vtanh.pop %v558
        %v560 = vmul.f32 %v559, 0.5
        %v561 = vadd.f32 %v560, 0.5
        %v562 = vmul.f32 %v561, %v476
        %564 = vrot.lane.b32.xlu0 %v559, 64
        %v565 = vpop.permute.xlu0 %564
        %v567 = vmul.f32 %v561, %v565
        %569 = vrot.lane.b32.xlu0 %v567, 32
        %v570 = vpop.permute.xlu0 %569
        %v572 = vadd.f32 %v562, %v570
        %v573 = vtanh.pop %v572
        %575 = vrot.lane.b32.xlu0 %v573, 64
        %v576 = vpop.permute.xlu0 %575
        %v578 = vmul.f32 %v561, %v576
        %580 = vrot.lane.b32.xlu0 %v578, 32
        %v581 = vpop.permute.xlu0 %580
        %v582 = vsel %vm384, %v581, 0
        %584 = vmatprep.subr.mxu0 0.0
        %585 = vmatpush1.msra.mxu0 %v378
        %586 = vmatprep.subr.mxu0 0.0
        %587 = vmatpush1.msra.mxu0 %v379
        %588 = vmatprep.subr.mxu0 0.0
        %589 = vmatpush1.msra.mxu0 %v380
        %590 = vmatprep.subr.mxu0 0.0
        %591 = vmatpush1.msra.mxu0 %v381
        %592 = vmatprep.subr.mxu0 0.0
        %593 = vmatpush1.msra.mxu0 0.0
        %594 = vmatprep.subr.mxu0 0.0
        %595 = vmatpush1.msra.mxu0 0.0
        %596 = vmatprep.subr.mxu0 0.0
        %597 = vmatpush1.msra.mxu0 0.0
        %598 = vmatprep.subr.mxu0 0.0
        %599 = vmatpush1.msra.mxu0 0.0
        %600 = vmatprep.subr.mxu0 0.0
        %601 = vmatpush1.msra.mxu0 0.0
        %602 = vmatprep.subr.mxu0 0.0
        %603 = vmatpush1.msra.mxu0 0.0
        %604 = vmatprep.subr.mxu0 0.0
        %605 = vmatpush1.msra.mxu0 0.0
        %606 = vmatprep.subr.mxu0 0.0
        %607 = vmatpush1.msra.mxu0 0.0
        %608 = vmatprep.subr.mxu0 0.0
        %609 = vmatpush1.msra.mxu0 0.0
        %610 = vmatprep.subr.mxu0 0.0
        %611 = vmatpush1.msra.mxu0 0.0
        %612 = vmatprep.subr.mxu0 0.0
        %613 = vmatpush1.msra.mxu0 0.0
        %614 = vmatprep.subr.mxu0 0.0
        %615 = vmatpush1.msra.mxu0 0.0
        %616 = vmatprep.subr.mxu0 0.0
        %617 = vmatpush1.msra.mxu0 0.0
        %618 = vmatprep.subr.mxu0 0.0
        %619 = vmatpush1.msra.mxu0 0.0
        %620 = vmatprep.subr.mxu0 0.0
        %621 = vmatpush1.msra.mxu0 0.0
        %622 = vmatprep.subr.mxu0 0.0
        %623 = vmatpush1.msra.mxu0 0.0
        %624 = vmatprep.subr.mxu0 0.0
        %625 = vmatpush1.msra.mxu0 0.0
        %626 = vmatprep.subr.mxu0 0.0
        %627 = vmatpush1.msra.mxu0 0.0
        %628 = vmatprep.subr.mxu0 0.0
        %629 = vmatpush1.msra.mxu0 0.0
        %630 = vmatprep.subr.mxu0 0.0
        %631 = vmatpush1.msra.mxu0 0.0
        %632 = vmatprep.subr.mxu0 0.0
        %633 = vmatpush1.msra.mxu0 0.0
        %634 = vmatprep.subr.mxu0 0.0
        %635 = vmatpush1.msra.mxu0 0.0
        %636 = vmatprep.subr.mxu0 0.0
        %637 = vmatpush1.msra.mxu0 0.0
        %638 = vmatprep.subr.mxu0 0.0
        %639 = vmatpush1.msra.mxu0 0.0
        %640 = vmatprep.subr.mxu0 0.0
        %641 = vmatpush1.msra.mxu0 0.0
        %642 = vmatprep.subr.mxu0 0.0
        %643 = vmatpush1.msra.mxu0 0.0
        %644 = vmatprep.subr.mxu0 0.0
        %645 = vmatpush1.msra.mxu0 0.0
        %646 = vmatprep.subr.mxu0 0.0
        %647 = vmatpush1.msra.mxu0 0.0
        %648 = vmatprep.mubr.f32.mxu0 0.0
        %649 = vmatmul.mubr.f32.gmra.mrb[0].mxu0 %v582
        %v650 = vpop.f32.mrb[0].mxu0
        %v651 = vadd.f32 0.0, %v650
        %v652 = vpop.f32.mrb[0].mxu0
        %653 = vdwg.mxu0
        %v654 = vadd.f32 %v350, %v651
        %v655 = vtanh.pop %v654
        %v656 = vmul.f32 %v655, 0.5
        %v657 = vadd.f32 %v656, 0.5
        %v658 = vmul.f32 %v657, %v572
        %660 = vrot.lane.b32.xlu0 %v655, 64
        %v661 = vpop.permute.xlu0 %660
        %v663 = vmul.f32 %v657, %v661
        %665 = vrot.lane.b32.xlu0 %v663, 32
        %v666 = vpop.permute.xlu0 %665
        %v668 = vadd.f32 %v658, %v666
        %v669 = vtanh.pop %v668
        %671 = vrot.lane.b32.xlu0 %v669, 64
        %v672 = vpop.permute.xlu0 %671
        %v674 = vmul.f32 %v657, %v672
        %676 = vrot.lane.b32.xlu0 %v674, 32
        %v677 = vpop.permute.xlu0 %676
        %v678 = vsel %vm384, %v677, 0
        %680 = vmatprep.subr.mxu0 0.0
        %681 = vmatpush1.msra.mxu0 %v378
        %682 = vmatprep.subr.mxu0 0.0
        %683 = vmatpush1.msra.mxu0 %v379
        %684 = vmatprep.subr.mxu0 0.0
        %685 = vmatpush1.msra.mxu0 %v380
        %686 = vmatprep.subr.mxu0 0.0
        %687 = vmatpush1.msra.mxu0 %v381
        %688 = vmatprep.subr.mxu0 0.0
        %689 = vmatpush1.msra.mxu0 0.0
        %690 = vmatprep.subr.mxu0 0.0
        %691 = vmatpush1.msra.mxu0 0.0
        %692 = vmatprep.subr.mxu0 0.0
        %693 = vmatpush1.msra.mxu0 0.0
        %694 = vmatprep.subr.mxu0 0.0
        %695 = vmatpush1.msra.mxu0 0.0
        %696 = vmatprep.subr.mxu0 0.0
        %697 = vmatpush1.msra.mxu0 0.0
        %698 = vmatprep.subr.mxu0 0.0
        %699 = vmatpush1.msra.mxu0 0.0
        %700 = vmatprep.subr.mxu0 0.0
        %701 = vmatpush1.msra.mxu0 0.0
        %702 = vmatprep.subr.mxu0 0.0
        %703 = vmatpush1.msra.mxu0 0.0
        %704 = vmatprep.subr.mxu0 0.0
        %705 = vmatpush1.msra.mxu0 0.0
        %706 = vmatprep.subr.mxu0 0.0
        %707 = vmatpush1.msra.mxu0 0.0
        %708 = vmatprep.subr.mxu0 0.0
        %709 = vmatpush1.msra.mxu0 0.0
        %710 = vmatprep.subr.mxu0 0.0
        %711 = vmatpush1.msra.mxu0 0.0
        %712 = vmatprep.subr.mxu0 0.0
        %713 = vmatpush1.msra.mxu0 0.0
        %714 = vmatprep.subr.mxu0 0.0
        %715 = vmatpush1.msra.mxu0 0.0
        %716 = vmatprep.subr.mxu0 0.0
        %717 = vmatpush1.msra.mxu0 0.0
        %718 = vmatprep.subr.mxu0 0.0
        %719 = vmatpush1.msra.mxu0 0.0
        %720 = vmatprep.subr.mxu0 0.0
        %721 = vmatpush1.msra.mxu0 0.0
        %722 = vmatprep.subr.mxu0 0.0
        %723 = vmatpush1.msra.mxu0 0.0
        %724 = vmatprep.subr.mxu0 0.0
        %725 = vmatpush1.msra.mxu0 0.0
        %726 = vmatprep.subr.mxu0 0.0
        %727 = vmatpush1.msra.mxu0 0.0
        %728 = vmatprep.subr.mxu0 0.0
        %729 = vmatpush1.msra.mxu0 0.0
        %730 = vmatprep.subr.mxu0 0.0
        %731 = vmatpush1.msra.mxu0 0.0
        %732 = vmatprep.subr.mxu0 0.0
        %733 = vmatpush1.msra.mxu0 0.0
        %734 = vmatprep.subr.mxu0 0.0
        %735 = vmatpush1.msra.mxu0 0.0
        %736 = vmatprep.subr.mxu0 0.0
        %737 = vmatpush1.msra.mxu0 0.0
        %738 = vmatprep.subr.mxu0 0.0
        %739 = vmatpush1.msra.mxu0 0.0
        %740 = vmatprep.subr.mxu0 0.0
        %741 = vmatpush1.msra.mxu0 0.0
        %742 = vmatprep.subr.mxu0 0.0
        %743 = vmatpush1.msra.mxu0 0.0
        %744 = vmatprep.mubr.f32.mxu0 0.0
        %745 = vmatmul.mubr.f32.gmra.mrb[0].mxu0 %v678
        %v746 = vpop.f32.mrb[0].mxu0
        %v747 = vadd.f32 0.0, %v746
        %v748 = vpop.f32.mrb[0].mxu0
        %749 = vdwg.mxu0
        %v750 = vadd.f32 %v355, %v747
        %v751 = vtanh.pop %v750
        %v752 = vmul.f32 %v751, 0.5
        %v753 = vadd.f32 %v752, 0.5
        %v754 = vmul.f32 %v753, %v668
        %756 = vrot.lane.b32.xlu0 %v751, 64
        %v757 = vpop.permute.xlu0 %756
        %v759 = vmul.f32 %v753, %v757
        %761 = vrot.lane.b32.xlu0 %v759, 32
        %v762 = vpop.permute.xlu0 %761
        %v764 = vadd.f32 %v754, %v762
        %v765 = vtanh.pop %v764
        %767 = vrot.lane.b32.xlu0 %v765, 64
        %v768 = vpop.permute.xlu0 %767
        %v770 = vmul.f32 %v753, %v768
        %772 = vrot.lane.b32.xlu0 %v770, 32
        %v773 = vpop.permute.xlu0 %772
        %v774 = vsel %vm384, %v773, 0
        %776 = vmatprep.subr.mxu0 0.0
        %777 = vmatpush1.msra.mxu0 %v378
        %778 = vmatprep.subr.mxu0 0.0
        %779 = vmatpush1.msra.mxu0 %v379
        %780 = vmatprep.subr.mxu0 0.0
        %781 = vmatpush1.msra.mxu0 %v380
        %782 = vmatprep.subr.mxu0 0.0
        %783 = vmatpush1.msra.mxu0 %v381
        %784 = vmatprep.subr.mxu0 0.0
        %785 = vmatpush1.msra.mxu0 0.0
        %786 = vmatprep.subr.mxu0 0.0
        %787 = vmatpush1.msra.mxu0 0.0
        %788 = vmatprep.subr.mxu0 0.0
        %789 = vmatpush1.msra.mxu0 0.0
        %790 = vmatprep.subr.mxu0 0.0
        %791 = vmatpush1.msra.mxu0 0.0
        %792 = vmatprep.subr.mxu0 0.0
        %793 = vmatpush1.msra.mxu0 0.0
        %794 = vmatprep.subr.mxu0 0.0
        %795 = vmatpush1.msra.mxu0 0.0
        %796 = vmatprep.subr.mxu0 0.0
        %797 = vmatpush1.msra.mxu0 0.0
        %798 = vmatprep.subr.mxu0 0.0
        %799 = vmatpush1.msra.mxu0 0.0
        %800 = vmatprep.subr.mxu0 0.0
        %801 = vmatpush1.msra.mxu0 0.0
        %802 = vmatprep.subr.mxu0 0.0
        %803 = vmatpush1.msra.mxu0 0.0
        %804 = vmatprep.subr.mxu0 0.0
        %805 = vmatpush1.msra.mxu0 0.0
        %806 = vmatprep.subr.mxu0 0.0
        %807 = vmatpush1.msra.mxu0 0.0
        %808 = vmatprep.subr.mxu0 0.0
        %809 = vmatpush1.msra.mxu0 0.0
        %810 = vmatprep.subr.mxu0 0.0
        %811 = vmatpush1.msra.mxu0 0.0
        %812 = vmatprep.subr.mxu0 0.0
        %813 = vmatpush1.msra.mxu0 0.0
        %814 = vmatprep.subr.mxu0 0.0
        %815 = vmatpush1.msra.mxu0 0.0
        %816 = vmatprep.subr.mxu0 0.0
        %817 = vmatpush1.msra.mxu0 0.0
        %818 = vmatprep.subr.mxu0 0.0
        %819 = vmatpush1.msra.mxu0 0.0
        %820 = vmatprep.subr.mxu0 0.0
        %821 = vmatpush1.msra.mxu0 0.0
        %822 = vmatprep.subr.mxu0 0.0
        %823 = vmatpush1.msra.mxu0 0.0
        %824 = vmatprep.subr.mxu0 0.0
        %825 = vmatpush1.msra.mxu0 0.0
        %826 = vmatprep.subr.mxu0 0.0
        %827 = vmatpush1.msra.mxu0 0.0
        %828 = vmatprep.subr.mxu0 0.0
        %829 = vmatpush1.msra.mxu0 0.0
        %830 = vmatprep.subr.mxu0 0.0
        %831 = vmatpush1.msra.mxu0 0.0
        %832 = vmatprep.subr.mxu0 0.0
        %833 = vmatpush1.msra.mxu0 0.0
        %834 = vmatprep.subr.mxu0 0.0
        %835 = vmatpush1.msra.mxu0 0.0
        %836 = vmatprep.subr.mxu0 0.0
        %837 = vmatpush1.msra.mxu0 0.0
        %838 = vmatprep.subr.mxu0 0.0
        %839 = vmatpush1.msra.mxu0 0.0
        %840 = vmatprep.mubr.f32.mxu0 0.0
        %841 = vmatmul.mubr.f32.gmra.mrb[0].mxu0 %v774
        %v842 = vpop.f32.mrb[0].mxu0
        %v843 = vadd.f32 0.0, %v842
        %v844 = vpop.f32.mrb[0].mxu0
        %845 = vdwg.mxu0
        %v846 = vadd.f32 %v360, %v843
        %v847 = vtanh.pop %v846
        %v848 = vmul.f32 %v847, 0.5
        %v849 = vadd.f32 %v848, 0.5
        %v850 = vmul.f32 %v849, %v764
        %852 = vrot.lane.b32.xlu0 %v847, 64
        %v853 = vpop.permute.xlu0 %852
        %v855 = vmul.f32 %v849, %v853
        %857 = vrot.lane.b32.xlu0 %v855, 32
        %v858 = vpop.permute.xlu0 %857
        %v860 = vadd.f32 %v850, %v858
        %v861 = vtanh.pop %v860
        %863 = vrot.lane.b32.xlu0 %v861, 64
        %v864 = vpop.permute.xlu0 %863
        %v866 = vmul.f32 %v849, %v864
        %868 = vrot.lane.b32.xlu0 %v866, 32
        %v869 = vpop.permute.xlu0 %868
        %v870 = vsel %vm384, %v869, 0
        %872 = vmatprep.subr.mxu0 0.0
        %873 = vmatpush1.msra.mxu0 %v378
        %874 = vmatprep.subr.mxu0 0.0
        %875 = vmatpush1.msra.mxu0 %v379
        %876 = vmatprep.subr.mxu0 0.0
        %877 = vmatpush1.msra.mxu0 %v380
        %878 = vmatprep.subr.mxu0 0.0
        %879 = vmatpush1.msra.mxu0 %v381
        %880 = vmatprep.subr.mxu0 0.0
        %881 = vmatpush1.msra.mxu0 0.0
        %882 = vmatprep.subr.mxu0 0.0
        %883 = vmatpush1.msra.mxu0 0.0
        %884 = vmatprep.subr.mxu0 0.0
        %885 = vmatpush1.msra.mxu0 0.0
        %886 = vmatprep.subr.mxu0 0.0
        %887 = vmatpush1.msra.mxu0 0.0
        %888 = vmatprep.subr.mxu0 0.0
        %889 = vmatpush1.msra.mxu0 0.0
        %890 = vmatprep.subr.mxu0 0.0
        %891 = vmatpush1.msra.mxu0 0.0
        %892 = vmatprep.subr.mxu0 0.0
        %893 = vmatpush1.msra.mxu0 0.0
        %894 = vmatprep.subr.mxu0 0.0
        %895 = vmatpush1.msra.mxu0 0.0
        %896 = vmatprep.subr.mxu0 0.0
        %897 = vmatpush1.msra.mxu0 0.0
        %898 = vmatprep.subr.mxu0 0.0
        %899 = vmatpush1.msra.mxu0 0.0
        %900 = vmatprep.subr.mxu0 0.0
        %901 = vmatpush1.msra.mxu0 0.0
        %902 = vmatprep.subr.mxu0 0.0
        %903 = vmatpush1.msra.mxu0 0.0
        %904 = vmatprep.subr.mxu0 0.0
        %905 = vmatpush1.msra.mxu0 0.0
        %906 = vmatprep.subr.mxu0 0.0
        %907 = vmatpush1.msra.mxu0 0.0
        %908 = vmatprep.subr.mxu0 0.0
        %909 = vmatpush1.msra.mxu0 0.0
        %910 = vmatprep.subr.mxu0 0.0
        %911 = vmatpush1.msra.mxu0 0.0
        %912 = vmatprep.subr.mxu0 0.0
        %913 = vmatpush1.msra.mxu0 0.0
        %914 = vmatprep.subr.mxu0 0.0
        %915 = vmatpush1.msra.mxu0 0.0
        %916 = vmatprep.subr.mxu0 0.0
        %917 = vmatpush1.msra.mxu0 0.0
        %918 = vmatprep.subr.mxu0 0.0
        %919 = vmatpush1.msra.mxu0 0.0
        %920 = vmatprep.subr.mxu0 0.0
        %921 = vmatpush1.msra.mxu0 0.0
        %922 = vmatprep.subr.mxu0 0.0
        %923 = vmatpush1.msra.mxu0 0.0
        %924 = vmatprep.subr.mxu0 0.0
        %925 = vmatpush1.msra.mxu0 0.0
        %926 = vmatprep.subr.mxu0 0.0
        %927 = vmatpush1.msra.mxu0 0.0
        %928 = vmatprep.subr.mxu0 0.0
        %929 = vmatpush1.msra.mxu0 0.0
        %930 = vmatprep.subr.mxu0 0.0
        %931 = vmatpush1.msra.mxu0 0.0
        %932 = vmatprep.subr.mxu0 0.0
        %933 = vmatpush1.msra.mxu0 0.0
        %934 = vmatprep.subr.mxu0 0.0
        %935 = vmatpush1.msra.mxu0 0.0
        %936 = vmatprep.mubr.f32.mxu0 0.0
        %937 = vmatmul.mubr.f32.gmra.mrb[0].mxu0 %v870
        %v938 = vpop.f32.mrb[0].mxu0
        %v939 = vadd.f32 0.0, %v938
        %v940 = vpop.f32.mrb[0].mxu0
        %941 = vdwg.mxu0
        %v942 = vadd.f32 %v365, %v939
        %v943 = vtanh.pop %v942
        %v944 = vmul.f32 %v943, 0.5
        %v945 = vadd.f32 %v944, 0.5
        %v946 = vmul.f32 %v945, %v860
        %948 = vrot.lane.b32.xlu0 %v943, 64
        %v949 = vpop.permute.xlu0 %948
        %v951 = vmul.f32 %v945, %v949
        %953 = vrot.lane.b32.xlu0 %v951, 32
        %v954 = vpop.permute.xlu0 %953
        %v956 = vadd.f32 %v946, %v954
        %v957 = vtanh.pop %v956
        %959 = vrot.lane.b32.xlu0 %v957, 64
        %v960 = vpop.permute.xlu0 %959
        %v962 = vmul.f32 %v945, %v960
        %964 = vrot.lane.b32.xlu0 %v962, 32
        %v965 = vpop.permute.xlu0 %964
        %v966 = vsel %vm384, %v965, 0
        %968 = vmatprep.subr.mxu0 0.0
        %969 = vmatpush1.msra.mxu0 %v378
        %970 = vmatprep.subr.mxu0 0.0
        %971 = vmatpush1.msra.mxu0 %v379
        %972 = vmatprep.subr.mxu0 0.0
        %973 = vmatpush1.msra.mxu0 %v380
        %974 = vmatprep.subr.mxu0 0.0
        %975 = vmatpush1.msra.mxu0 %v381
        %976 = vmatprep.subr.mxu0 0.0
        %977 = vmatpush1.msra.mxu0 0.0
        %978 = vmatprep.subr.mxu0 0.0
        %979 = vmatpush1.msra.mxu0 0.0
        %980 = vmatprep.subr.mxu0 0.0
        %981 = vmatpush1.msra.mxu0 0.0
        %982 = vmatprep.subr.mxu0 0.0
        %983 = vmatpush1.msra.mxu0 0.0
        %984 = vmatprep.subr.mxu0 0.0
        %985 = vmatpush1.msra.mxu0 0.0
        %986 = vmatprep.subr.mxu0 0.0
        %987 = vmatpush1.msra.mxu0 0.0
        %988 = vmatprep.subr.mxu0 0.0
        %989 = vmatpush1.msra.mxu0 0.0
        %990 = vmatprep.subr.mxu0 0.0
        %991 = vmatpush1.msra.mxu0 0.0
        %992 = vmatprep.subr.mxu0 0.0
        %993 = vmatpush1.msra.mxu0 0.0
        %994 = vmatprep.subr.mxu0 0.0
        %995 = vmatpush1.msra.mxu0 0.0
        %996 = vmatprep.subr.mxu0 0.0
        %997 = vmatpush1.msra.mxu0 0.0
        %998 = vmatprep.subr.mxu0 0.0
        %999 = vmatpush1.msra.mxu0 0.0
        %1000 = vmatprep.subr.mxu0 0.0
        %1001 = vmatpush1.msra.mxu0 0.0
        %1002 = vmatprep.subr.mxu0 0.0
        %1003 = vmatpush1.msra.mxu0 0.0
        %1004 = vmatprep.subr.mxu0 0.0
        %1005 = vmatpush1.msra.mxu0 0.0
        %1006 = vmatprep.subr.mxu0 0.0
        %1007 = vmatpush1.msra.mxu0 0.0
        %1008 = vmatprep.subr.mxu0 0.0
        %1009 = vmatpush1.msra.mxu0 0.0
        %1010 = vmatprep.subr.mxu0 0.0
        %1011 = vmatpush1.msra.mxu0 0.0
        %1012 = vmatprep.subr.mxu0 0.0
        %1013 = vmatpush1.msra.mxu0 0.0
        %1014 = vmatprep.subr.mxu0 0.0
        %1015 = vmatpush1.msra.mxu0 0.0
        %1016 = vmatprep.subr.mxu0 0.0
        %1017 = vmatpush1.msra.mxu0 0.0
        %1018 = vmatprep.subr.mxu0 0.0
        %1019 = vmatpush1.msra.mxu0 0.0
        %1020 = vmatprep.subr.mxu0 0.0
        %1021 = vmatpush1.msra.mxu0 0.0
        %1022 = vmatprep.subr.mxu0 0.0
        %1023 = vmatpush1.msra.mxu0 0.0
        %1024 = vmatprep.subr.mxu0 0.0
        %1025 = vmatpush1.msra.mxu0 0.0
        %1026 = vmatprep.subr.mxu0 0.0
        %1027 = vmatpush1.msra.mxu0 0.0
        %1028 = vmatprep.subr.mxu0 0.0
        %1029 = vmatpush1.msra.mxu0 0.0
        %1030 = vmatprep.subr.mxu0 0.0
        %1031 = vmatpush1.msra.mxu0 0.0
        %1032 = vmatprep.mubr.f32.mxu0 0.0
        %1033 = vmatmul.mubr.f32.gmra.mrb[0].mxu0 %v966
        %v1034 = vpop.f32.mrb[0].mxu0
        %v1035 = vadd.f32 0.0, %v1034
        %v1036 = vpop.f32.mrb[0].mxu0
        %1037 = vdwg.mxu0
        %v1038 = vadd.f32 %v370, %v1035
        %v1039 = vtanh.pop %v1038
        %v1040 = vmul.f32 %v1039, 0.5
        %v1041 = vadd.f32 %v1040, 0.5
        %v1042 = vmul.f32 %v1041, %v956
        %1044 = vrot.lane.b32.xlu0 %v1039, 64
        %v1045 = vpop.permute.xlu0 %1044
        %v1047 = vmul.f32 %v1041, %v1045
        %1049 = vrot.lane.b32.xlu0 %v1047, 32
        %v1050 = vpop.permute.xlu0 %1049
        %v1052 = vadd.f32 %v1042, %v1050
        %v1053 = vtanh.pop %v1052
        %1055 = vrot.lane.b32.xlu0 %v1053, 64
        %v1056 = vpop.permute.xlu0 %1055
        %v1058 = vmul.f32 %v1041, %v1056
        %1060 = vrot.lane.b32.xlu0 %v1058, 32
        %v1061 = vpop.permute.xlu0 %1060
        %v1062 = vsel %vm384, %v1061, 0
        %1064 = vmatprep.subr.mxu0 0.0
        %1065 = vmatpush1.msra.mxu0 %v378
        %1066 = vmatprep.subr.mxu0 0.0
        %1067 = vmatpush1.msra.mxu0 %v379
        %1068 = vmatprep.subr.mxu0 0.0
        %1069 = vmatpush1.msra.mxu0 %v380
        %1070 = vmatprep.subr.mxu0 0.0
        %1071 = vmatpush1.msra.mxu0 %v381
        %1072 = vmatprep.subr.mxu0 0.0
        %1073 = vmatpush1.msra.mxu0 0.0
        %1074 = vmatprep.subr.mxu0 0.0
        %1075 = vmatpush1.msra.mxu0 0.0
        %1076 = vmatprep.subr.mxu0 0.0
        %1077 = vmatpush1.msra.mxu0 0.0
        %1078 = vmatprep.subr.mxu0 0.0
        %1079 = vmatpush1.msra.mxu0 0.0
        %1080 = vmatprep.subr.mxu0 0.0
        %1081 = vmatpush1.msra.mxu0 0.0
        %1082 = vmatprep.subr.mxu0 0.0
        %1083 = vmatpush1.msra.mxu0 0.0
        %1084 = vmatprep.subr.mxu0 0.0
        %1085 = vmatpush1.msra.mxu0 0.0
        %1086 = vmatprep.subr.mxu0 0.0
        %1087 = vmatpush1.msra.mxu0 0.0
        %1088 = vmatprep.subr.mxu0 0.0
        %1089 = vmatpush1.msra.mxu0 0.0
        %1090 = vmatprep.subr.mxu0 0.0
        %1091 = vmatpush1.msra.mxu0 0.0
        %1092 = vmatprep.subr.mxu0 0.0
        %1093 = vmatpush1.msra.mxu0 0.0
        %1094 = vmatprep.subr.mxu0 0.0
        %1095 = vmatpush1.msra.mxu0 0.0
        %1096 = vmatprep.subr.mxu0 0.0
        %1097 = vmatpush1.msra.mxu0 0.0
        %1098 = vmatprep.subr.mxu0 0.0
        %1099 = vmatpush1.msra.mxu0 0.0
        %1100 = vmatprep.subr.mxu0 0.0
        %1101 = vmatpush1.msra.mxu0 0.0
        %1102 = vmatprep.subr.mxu0 0.0
        %1103 = vmatpush1.msra.mxu0 0.0
        %1104 = vmatprep.subr.mxu0 0.0
        %1105 = vmatpush1.msra.mxu0 0.0
        %1106 = vmatprep.subr.mxu0 0.0
        %1107 = vmatpush1.msra.mxu0 0.0
        %1108 = vmatprep.subr.mxu0 0.0
        %1109 = vmatpush1.msra.mxu0 0.0
        %1110 = vmatprep.subr.mxu0 0.0
        %1111 = vmatpush1.msra.mxu0 0.0
        %1112 = vmatprep.subr.mxu0 0.0
        %1113 = vmatpush1.msra.mxu0 0.0
        %1114 = vmatprep.subr.mxu0 0.0
        %1115 = vmatpush1.msra.mxu0 0.0
        %1116 = vmatprep.subr.mxu0 0.0
        %1117 = vmatpush1.msra.mxu0 0.0
        %1118 = vmatprep.subr.mxu0 0.0
        %1119 = vmatpush1.msra.mxu0 0.0
        %1120 = vmatprep.subr.mxu0 0.0
        %1121 = vmatpush1.msra.mxu0 0.0
        %1122 = vmatprep.subr.mxu0 0.0
        %1123 = vmatpush1.msra.mxu0 0.0
        %1124 = vmatprep.subr.mxu0 0.0
        %1125 = vmatpush1.msra.mxu0 0.0
        %1126 = vmatprep.subr.mxu0 0.0
        %1127 = vmatpush1.msra.mxu0 0.0
        %1128 = vmatprep.mubr.f32.mxu0 0.0
        %1129 = vmatmul.mubr.f32.gmra.mrb[0].mxu0 %v1062
        %v1130 = vpop.f32.mrb[0].mxu0
        %v1131 = vadd.f32 0.0, %v1130
        %v1132 = vpop.f32.mrb[0].mxu0
        %1133 = vdwg.mxu0
        %v1134 = vadd.f32 %v375, %v1131
        %v1135 = vtanh.pop %v1134
        %v1136 = vmul.f32 %v1135, 0.5
        %v1137 = vadd.f32 %v1136, 0.5
        %v1138 = vmul.f32 %v1137, %v1052
        %1140 = vrot.lane.b32.xlu0 %v1135, 64
        %v1141 = vpop.permute.xlu0 %1140
        %v1143 = vmul.f32 %v1137, %v1141
        %1145 = vrot.lane.b32.xlu0 %v1143, 32
        %v1146 = vpop.permute.xlu0 %1145
        %v1148 = vadd.f32 %v1138, %v1146
        %v1149 = vtanh.pop %v1148
        %1151 = vrot.lane.b32.xlu0 %v1149, 64
        %v1152 = vpop.permute.xlu0 %1151
        %v1154 = vmul.f32 %v1137, %v1152
        %1156 = vrot.lane.b32.xlu0 %v1154, 32
        %v1157 = vpop.permute.xlu0 %1156
        %1159 = vst.msk [vmem:[#allocation2] sm:$0xff] %vm384, %v1157
        %1161 = vrot.lane.b32.xlu0 %v1148, 96
        %v1162 = vpop.permute.xlu0 %1161
        %1164 = vst.msk [vmem:[#allocation3] sm:$0xff] %vm384, %v1162
        %1166 = vrot.lane.b32.xlu0 %v578, 64
        %v1167 = vpop.permute.xlu0 %1166
        %1169 = vrot.lane.b32.xlu0 %v674, 96
        %v1170 = vpop.permute.xlu0 %1169
        %1173 = vrot.lane.b32.xlu0 %v962, 64
        %v1174 = vpop.permute.xlu0 %1173
        %1176 = vrot.lane.b32.xlu0 %v1058, 96
        %v1177 = vpop.permute.xlu0 %1176
        %v1179 = vsel %vm384, %v485, %v1167
        %vm1180 = vcmask 523264
        %v1181 = vsel %vm1180, %v1179, %v1170
        %vm1182 = vcmask 785408
        %v1183 = vsel %vm1182, %v1181, %v770
        %v1184 = vsel %vm384, %v869, %v1174
        %v1185 = vsel %vm1180, %v1184, %v1177
        %v1186 = vsel %vm1182, %v1185, %v1154
        %1187 = vst [vmem:[%s218] sm:$0xff] %v1183
        %1188 = vst [vmem:[%s218 + $0x8] sm:$0xff] %v1186
        %s1189 = sand.u32 %s137, 1
        %s1190 = scalar_lea.sflag [#allocation5], %s1189
        %s1191 = sand.u32 %s137, 1
        %s1192 = smul.addr %s1191, 16
        %s1193 = scalar_lea.vmem [#allocation4], %s1192
        // Predicated region
        $region45: #{tpu_custom_call.1} parent=39 // pred_check
          %p1194 = pneg %p147
        $region46: #{tpu_custom_call.1} parent=39 // pred_check_branch
          %1196 = sbr.rel (%p1194) target = $region48
        $region47: #{tpu_custom_call.1} parent=39 // pred_region
          %s1197 = smul.u32 2, %s19
          %s1199 = ssub.s32 256, 256
          %1200 = vsyncadd %s1190, %s1199
          %s1201 = smul.addr %s1197, 128
          %s1202 = scalar_lea.hbm %s5, %s1201
          %s1204 = sshll.u32 %s1193, 4
          %s1205 = int_to_ptr.vmem [resolvable:$true] %s1204
          %1207 = dma.vmem_to_hbm [thread:$0]  %s1205, 256, %s1202, %s1190
        $region48: #{tpu_custom_call.1} parent=39 // pred_fallthru
          _
      $region40: #{tpu_custom_call.1} parent=5 // pred_fallthru
        _
      %p1208 = scmp.le.s32.totalorder 2, %s14
      // Predicated region
      $region49: #{tpu_custom_call.1} parent=5 // pred_check
        %p1209 = pneg %p1208
      $region50: #{tpu_custom_call.1} parent=5 // pred_check_branch
        %1211 = sbr.rel (%p1209) target = $region52
      $region51: #{tpu_custom_call.1} parent=5 // pred_region
        %s1212 = ssub.s32 %s14, 2
        // Predicated region
        $region53: #{tpu_custom_call.1} parent=51 // pred_check
          %p1213 = pneg %p153
        $region54: #{tpu_custom_call.1} parent=51 // pred_check_branch
          %1215 = sbr.rel (%p1213) target = $region56
        $region55: #{tpu_custom_call.1} parent=51 // pred_region
          %s1216 = sand.u32 %s138, 1
          %s1217 = scalar_lea.sflag [#allocation5], %s1216
          %s1218 = sand.u32 %s138, 1
          %s1219 = smul.addr %s1218, 16
          %s1220 = scalar_lea.vmem [#allocation4], %s1219
          %1221 = dma.done %s1217, 256
        $region56: #{tpu_custom_call.1} parent=51 // pred_fallthru
          _
      $region52: #{tpu_custom_call.1} parent=5 // pred_fallthru
        _
    $region6: #{tpu_custom_call.1} parent=1 // loop_footer
      %s18 = sadd.s32 1, %s14
    $region7: #{tpu_custom_call.1} parent=1 // loop_footer_branch
      %13 = sbr.rel target = $region3
    $region8: #{tpu_custom_call.1} parent=1 // loop_exit
      _
    %1222 = vsyncpa [#allocation5], 1
    %s1223 = scalar_lea.sflag [#allocation5], 1
    %1224 = vsyncpa %s1223, 1

</llo_original>
